<compile_context>
chip_gen: v6e
topology: v6e:2x2x1
jax: 0.10.0
libtpu: 0.0.40
codegen_flags: <defaults>
</compile_context>

<pallas_src>
import jax
import jax.numpy as jnp
from jax.experimental import pallas as pl
from jax.experimental.pallas import tpu as pltpu


# ----------------------------- Pallas kernel --------------------------------

def trancot_kernel(x_ref, y_ref, pool_ref, w_ref, vec_ref, o_ref):
    """One grid step = Bb batch elements, fused into a single (Bb*N, D) row block."""
    f32 = jnp.float32
    Bb, N, D = x_ref.shape

    # packed per-channel vectors (f32), one sublane each
    bproj = vec_ref[0:1, :]
    g1, bln1 = vec_ref[1:2, :], vec_ref[2:3, :]
    be1, be2 = vec_ref[3:4, :], vec_ref[4:5, :]
    bm1, bm2 = vec_ref[5:6, :], vec_ref[6:7, :]
    g2, bln2 = vec_ref[7:8, :], vec_ref[8:9, :]

    # six (D, D) weights stacked into one (6, D, D) input (single DMA / double buffer)
    wproj, we1, we2 = w_ref[0], w_ref[1], w_ref[2]
    wm1a, wm1b, wm2 = w_ref[3], w_ref[4], w_ref[5]

    def mm(a, w):
        # MXU matmul: operands in the weight dtype (bf16 in the production config),
        # accumulation always in f32.
        return jnp.dot(a.astype(w.dtype), w, preferred_element_type=f32)

    def layernorm_relu(v, g, b, eps):
        # one-pass mean / E[x^2] in f32; rsqrt runs on the EUP (no vector divide).
        # (Activations here are zero-ish mean; switch to the two-pass form if a large
        #  mean ever makes the E[x^2]-mean^2 cancellation an issue.)
        mean = jnp.mean(v, axis=-1, keepdims=True)
        ex2 = jnp.mean(v * v, axis=-1, keepdims=True)
        inv = jax.lax.rsqrt(ex2 - mean * mean + eps)
        return jnp.maximum((v - mean) * inv * g + b, 0.0)

    # ---- FCUDown, pooled BEFORE the 1x1 projection ---------------------------------
    # AvgPool2d commutes with the 1x1 conv (+bias) because every pool row sums to 1,
    # so we pool the raw feature map first and project only N tokens per image.
    pool = pool_ref[...]                                            # (N, Hc*Wc)
    pooled = jnp.concatenate(
        [jnp.dot(pool, y_ref[b], preferred_element_type=f32) for b in range(Bb)],
        axis=0)                                                     # (Bb*N, D), f32
    # (At realistic Hc*Wc this tiny 1/dw^2-dense matmul should become a VPU
    #  reshape-sum reduction; negligible at the 8x8 toy map.)
    t = mm(pooled, wproj) + bproj                                   # 1x1 conv (channel matmul)
    t = layernorm_relu(t, g1, bln1, 1e-6)

    # ---- embed: Linear -> ReLU -> Linear -> ReLU ------------------------------------
    e = jnp.maximum(mm(t, we1) + be1, 0.0)
    y_r = jnp.maximum(mm(e, we2) + be2, 0.0)

    # ---- transformer tokens: fold the batch into the matmul M dimension -------------
    x2 = x_ref[...].reshape(Bb * N, D)          # leading-dim merge: no data movement

    def mlp_split(a, b):
        # Mlp(cat([a, b], -1)) with fc1 weight pre-split -> two K=D matmuls, no concat
        h1 = jnp.maximum(mm(a, wm1a) + mm(b, wm1b) + bm1, 0.0)
        return mm(h1, wm2) + bm2

    # w = mlp(cat([y_r, x], -1));  w.view(B, H, W) is an identity reshape
    w = mlp_split(y_r, x2)
    # k = conv1x1(y_r) = LayerNorm(eps=1e-5) -> ReLU
    k = layernorm_relu(y_r, g2, bln2, 1e-5)
    # out = mlp(cat([w, k], -1));  proj_drop(p=0) is identity
    o_ref[...] = mlp_split(w, k).reshape(Bb, N, D).astype(o_ref.dtype)


# ------------------------------- wrapper -------------------------------------

def make_pool_matrix(Hc, Wc, dw, dtype):
    """AvgPool2d(dw, dw) over a row-major flattened (Hc, Wc) map as an (N, Hc*Wc) matrix."""
    Ho, Wo = Hc // dw, Wc // dw
    pix_r = jnp.arange(Hc * Wc) // Wc
    pix_c = jnp.arange(Hc * Wc) % Wc
    tok_of_pix = (pix_r // dw) * Wo + (pix_c // dw)                 # (Hc*Wc,)
    P = (jnp.arange(Ho * Wo)[:, None] == tok_of_pix[None, :]).astype(jnp.float32)
    return (P / float(dw * dw)).astype(dtype)


def trancot_layer(x, y_nchw, params, dw_stride, *, batch_block=4,
                  matmul_dtype=jnp.bfloat16):
    """x: (B, N, dim) tokens; y_nchw: (B, dim, Hc, Wc) CNN feature map (PyTorch NCHW)."""
    B, N, D = x.shape
    Bc, C, Hc, Wc = y_nchw.shape
    assert Bc == B and C == D
    # pool-before-projection is exact only with a complete, unpadded pooling cover
    assert Hc % dw_stride == 0 and Wc % dw_stride == 0
    assert (Hc // dw_stride) * (Wc // dw_stride) == N

    Bb = min(batch_block, B)
    assert B % Bb == 0
    # v7x note: keep B // Bb >= 2 so the "parallel" batch axis can shard across both
    # TensorCores; re-derive Bb against v7x's 64 MiB physical / 32 MiB scoped VMEM
    # (per-step footprint here is < 1 MiB, so no vmem_limit_bytes is needed).

    HW = Hc * Wc
    # channels-last, flattened spatial: channel dim maps to lanes (lane-dense)
    y_flat = jnp.transpose(y_nchw, (0, 2, 3, 1)).reshape(B, HW, D)

    # bf16 matmul operands (v6e/v7x MXU) + halved HBM/VMEM bytes for activations/weights
    x_in = x.astype(matmul_dtype)
    y_in = y_flat.astype(matmul_dtype)
    pool = make_pool_matrix(Hc, Wc, dw_stride, matmul_dtype)        # 1/dw^2 exact in bf16

    # stack the six (D, D) weights into one input; pre-split the shared Mlp fc1 weight
    # so cat(..., -1) @ wm1 becomes two K=D dots.  (Could additionally be marked
    # pipeline_mode=pl.Buffered(1) since its block index never changes.)
    wstack = jnp.stack([params['wproj'], params['we1'], params['we2'],
                        params['wm1'][:D], params['wm1'][D:], params['wm2']],
                       axis=0).astype(matmul_dtype)

    # pack all per-channel vectors (biases / LN affines) into one (9, D) f32 array
    vecs = jnp.stack([params['bproj'],
                      params['g1'], params['bln1'],
                      params['be1'], params['be2'],
                      params['bm1'], params['bm2'],
                      params['g2'], params['bln2']], axis=0).astype(jnp.float32)

    return pl.pallas_call(
        trancot_kernel,
        out_shape=jax.ShapeDtypeStruct((B, N, D), jnp.float32),
        grid_spec=pltpu.PrefetchScalarGridSpec(
            num_scalar_prefetch=0,
            grid=(B // Bb,),
            in_specs=[pl.BlockSpec((Bb, N, D), lambda g: (g, 0, 0)),
                      pl.BlockSpec((Bb, HW, D), lambda g: (g, 0, 0)),
                      pl.BlockSpec((N, HW), lambda g: (0, 0)),
                      pl.BlockSpec((6, D, D), lambda g: (0, 0, 0)),
                      pl.BlockSpec((9, D), lambda g: (0, 0))],
            out_specs=pl.BlockSpec((Bb, N, D), lambda g: (g, 0, 0)),
        ),
        compiler_params=pltpu.CompilerParams(
            dimension_semantics=("parallel",)),
    )(x_in, y_in, pool, wstack, vecs)


# ------------------------- synthetic parameters ------------------------------

def make_params(key, dim):
    ks = iter(jax.random.split(key, 16))

    def nrm(shape, scale=0.1):
        return (scale * jax.random.normal(next(ks), shape)).astype(jnp.float32)

    p = {}
    # FCUDown: conv_project (1x1, bias) + LayerNorm(eps=1e-6)
    p['wproj'] = nrm((dim, dim));  p['bproj'] = nrm((dim,))
    p['g1'] = 1.0 + nrm((dim,));   p['bln1'] = nrm((dim,))
    # embed: Linear -> ReLU -> Linear -> ReLU   (weights stored as (in, out))
    p['we1'] = nrm((dim, dim));    p['be1'] = nrm((dim,))
    p['we2'] = nrm((dim, dim));    p['be2'] = nrm((dim,))
    # shared Mlp: Linear(2*dim -> dim) -> ReLU -> Linear(dim -> dim)
    p['wm1'] = nrm((2 * dim, dim)); p['bm1'] = nrm((dim,))
    p['wm2'] = nrm((dim, dim));     p['bm2'] = nrm((dim,))
    # conv1x1: LayerNorm(eps=1e-5)
    p['g2'] = 1.0 + nrm((dim,));   p['bln2'] = nrm((dim,))
    return p


# --------------------------- pure-JAX reference ------------------------------

def ref_forward(x, y_nchw, p, dw, matmul_dtype=jnp.float32):
    """Follows the PyTorch TranCotLayer.forward op-by-op (optionally with bf16 matmul
    operands + f32 accumulation, i.e. the same compute dtype as the kernel)."""
    B, N, D = x.shape
    _, C, Hc, Wc = y_nchw.shape

    def mm(a, w):
        return jnp.einsum('...d,de->...e', a.astype(matmul_dtype), w.astype(matmul_dtype),
                          precision=jax.lax.Precision.HIGHEST,
                          preferred_element_type=jnp.float32)

    def layernorm(v, g, b, eps):
        mean = v.mean(-1, keepdims=True)
        var = ((v - mean) ** 2).mean(-1, keepdims=True)     # biased, as torch
        return (v - mean) / jnp.sqrt(var + eps) * g + b

    # FCUDown: 1x1 conv -> AvgPool2d -> flatten(2).transpose(1,2) -> LN(1e-6) -> ReLU
    y_nhwc = jnp.transpose(y_nchw, (0, 2, 3, 1))
    h = mm(y_nhwc, p['wproj']) + p['bproj']
    Ho, Wo = Hc // dw, Wc // dw
    t = h.reshape(B, Ho, dw, Wo, dw, D).mean(axis=(2, 4)).reshape(B, Ho * Wo, D)
    y_r = jax.nn.relu(layernorm(t, p['g1'], p['bln1'], 1e-6))
    # embed
    y_r = jax.nn.relu(mm(y_r, p['we1']) + p['be1'])
    y_r = jax.nn.relu(mm(y_r, p['we2']) + p['be2'])

    def mlp(a):
        h1 = jax.nn.relu(mm(a, p['wm1']) + p['bm1'])
        return mm(h1, p['wm2']) + p['bm2']

    w = mlp(jnp.concatenate([y_r, x], axis=-1))             # (B, N, D); view(B,H,W) = identity
    k = jax.nn.relu(layernorm(y_r, p['g2'], p['bln2'], 1e-5))
    return mlp(jnp.concatenate([w, k], axis=-1))


# --------------------------------- main --------------------------------------

if __name__ == "__main__":
    # dim = 128 (lane-dense), dw_stride = 2, 8x8 CNN map -> 4x4 = 16 tokens per image.
    # batch 8, blocked 4 per grid step -> 64-row MXU matmuls and 2 parallel grid steps.
    B, D, dw = 8, 128, 2
    Hc = Wc = 8
    N = (Hc // dw) * (Wc // dw)
    Bb = 4

    key = jax.random.PRNGKey(0)
    kx, ky, kp = jax.random.split(key, 3)
    x = jax.random.normal(kx, (B, N, D), jnp.float32)
    y = jax.random.normal(ky, (B, D, Hc, Wc), jnp.float32)      # PyTorch NCHW layout
    params = make_params(kp, D)

    # 1) exact-math config (f32 operands): tight check of the restructured kernel
    #    (pool-first FCUDown, split-matmul concat, batch-fused rows, stacked weights).
    out32 = jax.block_until_ready(
        trancot_layer(x, y, params, dw, batch_block=Bb, matmul_dtype=jnp.float32))
    ref32 = ref_forward(x, y, params, dw, matmul_dtype=jnp.float32)
    err32 = float(jnp.max(jnp.abs(out32 - ref32)))
    assert jnp.allclose(out32, ref32, atol=5e-3, rtol=5e-3), f"f32 max abs err {err32}"

    # 2) production config (v6e/v7x): bf16 MXU operands, f32 accumulation.  Compared
    #    against the reference run with the same matmul dtype; the looser tolerance
    #    covers bf16 rounding of the pool-first / split-matmul reassociation across
    #    the 6-matmul-deep chain.
    out16 = jax.block_until_ready(
        trancot_layer(x, y, params, dw, batch_block=Bb, matmul_dtype=jnp.bfloat16))
    ref16 = ref_forward(x, y, params, dw, matmul_dtype=jnp.bfloat16)
    err16 = float(jnp.max(jnp.abs(out16 - ref16)))
    assert jnp.allclose(out16, ref16, atol=1.5e-1, rtol=5e-2), f"bf16 max abs err {err16}"

    print("KERNEL_OK")
</pallas_src>

<mosaic_0001>
module attributes {stable_mosaic.version = 11 : i64} {
  func.func @trancot_kernel(%arg0: i32, %arg1: memref<4x16x128xf32, #tpu.memory_space<vmem>>, %arg2: memref<4x64x128xf32, #tpu.memory_space<vmem>>, %arg3: memref<16x64xf32, #tpu.memory_space<vmem>>, %arg4: memref<6x128x128xf32, #tpu.memory_space<vmem>>, %arg5: memref<9x128xf32, #tpu.memory_space<vmem>>, %arg6: memref<4x16x128xf32, #tpu.memory_space<vmem>>) attributes {dimension_semantics = [#tpu.dimension_semantics<parallel>], iteration_bounds = array<i64: 2>, scalar_prefetch = 0 : i64, scratch_operands = 0 : i64, tpu.core_type = #tpu.core_type<tc>, window_params = [{transform_indices = @transform_0, window_bounds = array<i64: 4, 16, 128>}, {transform_indices = @transform_1, window_bounds = array<i64: 4, 64, 128>}, {pipeline_mode = #tpu.pipeline_mode<synchronous>, transform_indices = @transform_2, window_bounds = array<i64: 16, 64>}, {pipeline_mode = #tpu.pipeline_mode<synchronous>, transform_indices = @transform_3, window_bounds = array<i64: 6, 128, 128>}, {pipeline_mode = #tpu.pipeline_mode<synchronous>, transform_indices = @transform_4, window_bounds = array<i64: 9, 128>}, {transform_indices = @transform_5, window_bounds = array<i64: 4, 16, 128>}]} {
    %c0 = arith.constant 0 : index
    %c0_0 = arith.constant 0 : index
    %0 = vector.load %arg5[%c0, %c0_0] : memref<9x128xf32, #tpu.memory_space<vmem>>, vector<1x128xf32>
    %c1 = arith.constant 1 : index
    %c0_1 = arith.constant 0 : index
    %1 = vector.load %arg5[%c1, %c0_1] : memref<9x128xf32, #tpu.memory_space<vmem>>, vector<1x128xf32>
    %c2 = arith.constant 2 : index
    %c0_2 = arith.constant 0 : index
    %2 = vector.load %arg5[%c2, %c0_2] : memref<9x128xf32, #tpu.memory_space<vmem>>, vector<1x128xf32>
    %c3 = arith.constant 3 : index
    %c0_3 = arith.constant 0 : index
    %3 = vector.load %arg5[%c3, %c0_3] : memref<9x128xf32, #tpu.memory_space<vmem>>, vector<1x128xf32>
    %c4 = arith.constant 4 : index
    %c0_4 = arith.constant 0 : index
    %4 = vector.load %arg5[%c4, %c0_4] : memref<9x128xf32, #tpu.memory_space<vmem>>, vector<1x128xf32>
    %c5 = arith.constant 5 : index
    %c0_5 = arith.constant 0 : index
    %5 = vector.load %arg5[%c5, %c0_5] : memref<9x128xf32, #tpu.memory_space<vmem>>, vector<1x128xf32>
    %c6 = arith.constant 6 : index
    %c0_6 = arith.constant 0 : index
    %6 = vector.load %arg5[%c6, %c0_6] : memref<9x128xf32, #tpu.memory_space<vmem>>, vector<1x128xf32>
    %c7 = arith.constant 7 : index
    %c0_7 = arith.constant 0 : index
    %7 = vector.load %arg5[%c7, %c0_7] : memref<9x128xf32, #tpu.memory_space<vmem>>, vector<1x128xf32>
    %c8 = arith.constant 8 : index
    %c0_8 = arith.constant 0 : index
    %8 = vector.load %arg5[%c8, %c0_8] : memref<9x128xf32, #tpu.memory_space<vmem>>, vector<1x128xf32>
    %c0_9 = arith.constant 0 : index
    %c0_10 = arith.constant 0 : index
    %c0_11 = arith.constant 0 : index
    %9 = vector.load %arg4[%c0_9, %c0_10, %c0_11] : memref<6x128x128xf32, #tpu.memory_space<vmem>>, vector<1x128x128xf32>
    %10 = vector.shape_cast %9 : vector<1x128x128xf32> to vector<128x128xf32>
    %c1_12 = arith.constant 1 : index
    %c0_13 = arith.constant 0 : index
    %c0_14 = arith.constant 0 : index
    %11 = vector.load %arg4[%c1_12, %c0_13, %c0_14] : memref<6x128x128xf32, #tpu.memory_space<vmem>>, vector<1x128x128xf32>
    %12 = vector.shape_cast %11 : vector<1x128x128xf32> to vector<128x128xf32>
    %c2_15 = arith.constant 2 : index
    %c0_16 = arith.constant 0 : index
    %c0_17 = arith.constant 0 : index
    %13 = vector.load %arg4[%c2_15, %c0_16, %c0_17] : memref<6x128x128xf32, #tpu.memory_space<vmem>>, vector<1x128x128xf32>
    %14 = vector.shape_cast %13 : vector<1x128x128xf32> to vector<128x128xf32>
    %c3_18 = arith.constant 3 : index
    %c0_19 = arith.constant 0 : index
    %c0_20 = arith.constant 0 : index
    %15 = vector.load %arg4[%c3_18, %c0_19, %c0_20] : memref<6x128x128xf32, #tpu.memory_space<vmem>>, vector<1x128x128xf32>
    %16 = vector.shape_cast %15 : vector<1x128x128xf32> to vector<128x128xf32>
    %c4_21 = arith.constant 4 : index
    %c0_22 = arith.constant 0 : index
    %c0_23 = arith.constant 0 : index
    %17 = vector.load %arg4[%c4_21, %c0_22, %c0_23] : memref<6x128x128xf32, #tpu.memory_space<vmem>>, vector<1x128x128xf32>
    %18 = vector.shape_cast %17 : vector<1x128x128xf32> to vector<128x128xf32>
    %c5_24 = arith.constant 5 : index
    %c0_25 = arith.constant 0 : index
    %c0_26 = arith.constant 0 : index
    %19 = vector.load %arg4[%c5_24, %c0_25, %c0_26] : memref<6x128x128xf32, #tpu.memory_space<vmem>>, vector<1x128x128xf32>
    %20 = vector.shape_cast %19 : vector<1x128x128xf32> to vector<128x128xf32>
    %c0_27 = arith.constant 0 : index
    %c0_28 = arith.constant 0 : index
    %21 = vector.load %arg3[%c0_27, %c0_28] : memref<16x64xf32, #tpu.memory_space<vmem>>, vector<16x64xf32>
    %c0_29 = arith.constant 0 : index
    %c0_30 = arith.constant 0 : index
    %c0_31 = arith.constant 0 : index
    %22 = vector.load %arg2[%c0_29, %c0_30, %c0_31] : memref<4x64x128xf32, #tpu.memory_space<vmem>>, vector<1x64x128xf32>
    %23 = vector.shape_cast %22 : vector<1x64x128xf32> to vector<64x128xf32>
    %cst = arith.constant dense<0.000000e+00> : vector<16x128xf32>
    %24 = tpu.matmul %21, %23, %cst {dimension_numbers = #tpu.dot_dimension_numbers<[1], [0], [0], [1], [0, 0, 1, 1], [], []>} : vector<16x64xf32>, vector<64x128xf32>, vector<16x128xf32> -> vector<16x128xf32>
    %c1_32 = arith.constant 1 : index
    %c0_33 = arith.constant 0 : index
    %c0_34 = arith.constant 0 : index
    %25 = vector.load %arg2[%c1_32, %c0_33, %c0_34] : memref<4x64x128xf32, #tpu.memory_space<vmem>>, vector<1x64x128xf32>
    %26 = vector.shape_cast %25 : vector<1x64x128xf32> to vector<64x128xf32>
    %cst_35 = arith.constant dense<0.000000e+00> : vector<16x128xf32>
    %27 = tpu.matmul %21, %26, %cst_35 {dimension_numbers = #tpu.dot_dimension_numbers<[1], [0], [0], [1], [0, 0, 1, 1], [], []>} : vector<16x64xf32>, vector<64x128xf32>, vector<16x128xf32> -> vector<16x128xf32>
    %c2_36 = arith.constant 2 : index
    %c0_37 = arith.constant 0 : index
    %c0_38 = arith.constant 0 : index
    %28 = vector.load %arg2[%c2_36, %c0_37, %c0_38] : memref<4x64x128xf32, #tpu.memory_space<vmem>>, vector<1x64x128xf32>
    %29 = vector.shape_cast %28 : vector<1x64x128xf32> to vector<64x128xf32>
    %cst_39 = arith.constant dense<0.000000e+00> : vector<16x128xf32>
    %30 = tpu.matmul %21, %29, %cst_39 {dimension_numbers = #tpu.dot_dimension_numbers<[1], [0], [0], [1], [0, 0, 1, 1], [], []>} : vector<16x64xf32>, vector<64x128xf32>, vector<16x128xf32> -> vector<16x128xf32>
    %c3_40 = arith.constant 3 : index
    %c0_41 = arith.constant 0 : index
    %c0_42 = arith.constant 0 : index
    %31 = vector.load %arg2[%c3_40, %c0_41, %c0_42] : memref<4x64x128xf32, #tpu.memory_space<vmem>>, vector<1x64x128xf32>
    %32 = vector.shape_cast %31 : vector<1x64x128xf32> to vector<64x128xf32>
    %cst_43 = arith.constant dense<0.000000e+00> : vector<16x128xf32>
    %33 = tpu.matmul %21, %32, %cst_43 {dimension_numbers = #tpu.dot_dimension_numbers<[1], [0], [0], [1], [0, 0, 1, 1], [], []>} : vector<16x64xf32>, vector<64x128xf32>, vector<16x128xf32> -> vector<16x128xf32>
    %34 = tpu.concatenate %24, %27, %30, %33 in 0 : vector<16x128xf32>, vector<16x128xf32>, vector<16x128xf32>, vector<16x128xf32> -> vector<64x128xf32>
    %cst_44 = arith.constant dense<0.000000e+00> : vector<64x128xf32>
    %35 = tpu.matmul %34, %10, %cst_44 {dimension_numbers = #tpu.dot_dimension_numbers<[1], [0], [0], [1], [0, 0, 1, 1], [], []>} : vector<64x128xf32>, vector<128x128xf32>, vector<64x128xf32> -> vector<64x128xf32>
    %36 = vector.broadcast %0 : vector<1x128xf32> to vector<64x128xf32>
    %37 = arith.addf %35, %36 : vector<64x128xf32>
    %cst_45 = arith.constant dense<0.000000e+00> : vector<64xf32>
    %38 = vector.multi_reduction <add>, %37, %cst_45 [1] : vector<64x128xf32> to vector<64xf32>
    %39 = vector.shape_cast %38 : vector<64xf32> to vector<64x1xf32>
    %cst_46 = arith.constant 1.280000e+02 : f32
    %40 = vector.broadcast %cst_46 : f32 to vector<64x1xf32>
    %41 = arith.divf %39, %40 : vector<64x1xf32>
    %42 = arith.mulf %37, %37 : vector<64x128xf32>
    %cst_47 = arith.constant dense<0.000000e+00> : vector<64xf32>
    %43 = vector.multi_reduction <add>, %42, %cst_47 [1] : vector<64x128xf32> to vector<64xf32>
    %44 = vector.shape_cast %43 : vector<64xf32> to vector<64x1xf32>
    %cst_48 = arith.constant 1.280000e+02 : f32
    %45 = vector.broadcast %cst_48 : f32 to vector<64x1xf32>
    %46 = arith.divf %44, %45 : vector<64x1xf32>
    %47 = arith.mulf %41, %41 : vector<64x1xf32>
    %48 = arith.subf %46, %47 : vector<64x1xf32>
    %cst_49 = arith.constant 9.99999997E-7 : f32
    %49 = vector.broadcast %cst_49 : f32 to vector<64x1xf32>
    %50 = arith.addf %48, %49 : vector<64x1xf32>
    %51 = math.rsqrt %50 : vector<64x1xf32>
    %52 = vector.broadcast %41 : vector<64x1xf32> to vector<64x128xf32>
    %53 = arith.subf %37, %52 : vector<64x128xf32>
    %54 = vector.broadcast %51 : vector<64x1xf32> to vector<64x128xf32>
    %55 = arith.mulf %53, %54 : vector<64x128xf32>
    %56 = vector.broadcast %1 : vector<1x128xf32> to vector<64x128xf32>
    %57 = arith.mulf %55, %56 : vector<64x128xf32>
    %58 = vector.broadcast %2 : vector<1x128xf32> to vector<64x128xf32>
    %59 = arith.addf %57, %58 : vector<64x128xf32>
    %cst_50 = arith.constant 0.000000e+00 : f32
    %60 = vector.broadcast %cst_50 : f32 to vector<64x128xf32>
    %61 = arith.maximumf %59, %60 : vector<64x128xf32>
    %cst_51 = arith.constant dense<0.000000e+00> : vector<64x128xf32>
    %62 = tpu.matmul %61, %12, %cst_51 {dimension_numbers = #tpu.dot_dimension_numbers<[1], [0], [0], [1], [0, 0, 1, 1], [], []>} : vector<64x128xf32>, vector<128x128xf32>, vector<64x128xf32> -> vector<64x128xf32>
    %63 = vector.broadcast %3 : vector<1x128xf32> to vector<64x128xf32>
    %64 = arith.addf %62, %63 : vector<64x128xf32>
    %cst_52 = arith.constant 0.000000e+00 : f32
    %65 = vector.broadcast %cst_52 : f32 to vector<64x128xf32>
    %66 = arith.maximumf %64, %65 : vector<64x128xf32>
    %cst_53 = arith.constant dense<0.000000e+00> : vector<64x128xf32>
    %67 = tpu.matmul %66, %14, %cst_53 {dimension_numbers = #tpu.dot_dimension_numbers<[1], [0], [0], [1], [0, 0, 1, 1], [], []>} : vector<64x128xf32>, vector<128x128xf32>, vector<64x128xf32> -> vector<64x128xf32>
    %68 = vector.broadcast %4 : vector<1x128xf32> to vector<64x128xf32>
    %69 = arith.addf %67, %68 : vector<64x128xf32>
    %cst_54 = arith.constant 0.000000e+00 : f32
    %70 = vector.broadcast %cst_54 : f32 to vector<64x128xf32>
    %71 = arith.maximumf %69, %70 : vector<64x128xf32>
    %c0_55 = arith.constant 0 : index
    %c0_56 = arith.constant 0 : index
    %c0_57 = arith.constant 0 : index
    %72 = vector.load %arg1[%c0_55, %c0_56, %c0_57] : memref<4x16x128xf32, #tpu.memory_space<vmem>>, vector<4x16x128xf32>
    %73 = vector.shape_cast %72 : vector<4x16x128xf32> to vector<64x128xf32>
    %cst_58 = arith.constant dense<0.000000e+00> : vector<64x128xf32>
    %74 = tpu.matmul %71, %16, %cst_58 {dimension_numbers = #tpu.dot_dimension_numbers<[1], [0], [0], [1], [0, 0, 1, 1], [], []>} : vector<64x128xf32>, vector<128x128xf32>, vector<64x128xf32> -> vector<64x128xf32>
    %cst_59 = arith.constant dense<0.000000e+00> : vector<64x128xf32>
    %75 = tpu.matmul %73, %18, %cst_59 {dimension_numbers = #tpu.dot_dimension_numbers<[1], [0], [0], [1], [0, 0, 1, 1], [], []>} : vector<64x128xf32>, vector<128x128xf32>, vector<64x128xf32> -> vector<64x128xf32>
    %76 = arith.addf %74, %75 : vector<64x128xf32>
    %77 = vector.broadcast %5 : vector<1x128xf32> to vector<64x128xf32>
    %78 = arith.addf %76, %77 : vector<64x128xf32>
    %cst_60 = arith.constant 0.000000e+00 : f32
    %79 = vector.broadcast %cst_60 : f32 to vector<64x128xf32>
    %80 = arith.maximumf %78, %79 : vector<64x128xf32>
    %cst_61 = arith.constant dense<0.000000e+00> : vector<64x128xf32>
    %81 = tpu.matmul %80, %20, %cst_61 {dimension_numbers = #tpu.dot_dimension_numbers<[1], [0], [0], [1], [0, 0, 1, 1], [], []>} : vector<64x128xf32>, vector<128x128xf32>, vector<64x128xf32> -> vector<64x128xf32>
    %82 = vector.broadcast %6 : vector<1x128xf32> to vector<64x128xf32>
    %83 = arith.addf %81, %82 : vector<64x128xf32>
    %cst_62 = arith.constant dense<0.000000e+00> : vector<64xf32>
    %84 = vector.multi_reduction <add>, %71, %cst_62 [1] : vector<64x128xf32> to vector<64xf32>
    %85 = vector.shape_cast %84 : vector<64xf32> to vector<64x1xf32>
    %cst_63 = arith.constant 1.280000e+02 : f32
    %86 = vector.broadcast %cst_63 : f32 to vector<64x1xf32>
    %87 = arith.divf %85, %86 : vector<64x1xf32>
    %88 = arith.mulf %71, %71 : vector<64x128xf32>
    %cst_64 = arith.constant dense<0.000000e+00> : vector<64xf32>
    %89 = vector.multi_reduction <add>, %88, %cst_64 [1] : vector<64x128xf32> to vector<64xf32>
    %90 = vector.shape_cast %89 : vector<64xf32> to vector<64x1xf32>
    %cst_65 = arith.constant 1.280000e+02 : f32
    %91 = vector.broadcast %cst_65 : f32 to vector<64x1xf32>
    %92 = arith.divf %90, %91 : vector<64x1xf32>
    %93 = arith.mulf %87, %87 : vector<64x1xf32>
    %94 = arith.subf %92, %93 : vector<64x1xf32>
    %cst_66 = arith.constant 9.99999974E-6 : f32
    %95 = vector.broadcast %cst_66 : f32 to vector<64x1xf32>
    %96 = arith.addf %94, %95 : vector<64x1xf32>
    %97 = math.rsqrt %96 : vector<64x1xf32>
    %98 = vector.broadcast %87 : vector<64x1xf32> to vector<64x128xf32>
    %99 = arith.subf %71, %98 : vector<64x128xf32>
    %100 = vector.broadcast %97 : vector<64x1xf32> to vector<64x128xf32>
    %101 = arith.mulf %99, %100 : vector<64x128xf32>
    %102 = vector.broadcast %7 : vector<1x128xf32> to vector<64x128xf32>
    %103 = arith.mulf %101, %102 : vector<64x128xf32>
    %104 = vector.broadcast %8 : vector<1x128xf32> to vector<64x128xf32>
    %105 = arith.addf %103, %104 : vector<64x128xf32>
    %cst_67 = arith.constant 0.000000e+00 : f32
    %106 = vector.broadcast %cst_67 : f32 to vector<64x128xf32>
    %107 = arith.maximumf %105, %106 : vector<64x128xf32>
    %cst_68 = arith.constant dense<0.000000e+00> : vector<64x128xf32>
    %108 = tpu.matmul %83, %16, %cst_68 {dimension_numbers = #tpu.dot_dimension_numbers<[1], [0], [0], [1], [0, 0, 1, 1], [], []>} : vector<64x128xf32>, vector<128x128xf32>, vector<64x128xf32> -> vector<64x128xf32>
    %cst_69 = arith.constant dense<0.000000e+00> : vector<64x128xf32>
    %109 = tpu.matmul %107, %18, %cst_69 {dimension_numbers = #tpu.dot_dimension_numbers<[1], [0], [0], [1], [0, 0, 1, 1], [], []>} : vector<64x128xf32>, vector<128x128xf32>, vector<64x128xf32> -> vector<64x128xf32>
    %110 = arith.addf %108, %109 : vector<64x128xf32>
    %111 = vector.broadcast %5 : vector<1x128xf32> to vector<64x128xf32>
    %112 = arith.addf %110, %111 : vector<64x128xf32>
    %cst_70 = arith.constant 0.000000e+00 : f32
    %113 = vector.broadcast %cst_70 : f32 to vector<64x128xf32>
    %114 = arith.maximumf %112, %113 : vector<64x128xf32>
    %cst_71 = arith.constant dense<0.000000e+00> : vector<64x128xf32>
    %115 = tpu.matmul %114, %20, %cst_71 {dimension_numbers = #tpu.dot_dimension_numbers<[1], [0], [0], [1], [0, 0, 1, 1], [], []>} : vector<64x128xf32>, vector<128x128xf32>, vector<64x128xf32> -> vector<64x128xf32>
    %116 = vector.broadcast %6 : vector<1x128xf32> to vector<64x128xf32>
    %117 = arith.addf %115, %116 : vector<64x128xf32>
    %118 = vector.shape_cast %117 : vector<64x128xf32> to vector<4x16x128xf32>
    %c0_72 = arith.constant 0 : index
    %c0_73 = arith.constant 0 : index
    %c0_74 = arith.constant 0 : index
    %119 = vector.load %arg6[%c0_72, %c0_73, %c0_74] : memref<4x16x128xf32, #tpu.memory_space<vmem>>, vector<4x16x128xf32>
    tpu.vector_store %arg6[%c0_72, %c0_73, %c0_74], %118 {strides = array<i32>} : memref<4x16x128xf32, #tpu.memory_space<vmem>>, vector<4x16x128xf32>,
    return
  }
  func.func @transform_0(%arg0: i32) -> (i32, i32, i32) {
    %c0_i32 = arith.constant 0 : i32
    %c0_i32_0 = arith.constant 0 : i32
    %c0_i32_1 = arith.constant 0 : i32
    return %arg0, %c0_i32, %c0_i32_0 : i32, i32, i32
  }
  func.func @transform_1(%arg0: i32) -> (i32, i32, i32) {
    %c0_i32 = arith.constant 0 : i32
    %c0_i32_0 = arith.constant 0 : i32
    %c0_i32_1 = arith.constant 0 : i32
    return %arg0, %c0_i32, %c0_i32_0 : i32, i32, i32
  }
  func.func @transform_2(%arg0: i32) -> (i32, i32) {
    %c0_i32 = arith.constant 0 : i32
    %c0_i32_0 = arith.constant 0 : i32
    %c0_i32_1 = arith.constant 0 : i32
    return %c0_i32, %c0_i32_0 : i32, i32
  }
  func.func @transform_3(%arg0: i32) -> (i32, i32, i32) {
    %c0_i32 = arith.constant 0 : i32
    %c0_i32_0 = arith.constant 0 : i32
    %c0_i32_1 = arith.constant 0 : i32
    %c0_i32_2 = arith.constant 0 : i32
    return %c0_i32, %c0_i32_0, %c0_i32_1 : i32, i32, i32
  }
  func.func @transform_4(%arg0: i32) -> (i32, i32) {
    %c0_i32 = arith.constant 0 : i32
    %c0_i32_0 = arith.constant 0 : i32
    %c0_i32_1 = arith.constant 0 : i32
    return %c0_i32, %c0_i32_0 : i32, i32
  }
  func.func @transform_5(%arg0: i32) -> (i32, i32, i32) {
    %c0_i32 = arith.constant 0 : i32
    %c0_i32_0 = arith.constant 0 : i32
    %c0_i32_1 = arith.constant 0 : i32
    return %arg0, %c0_i32, %c0_i32_0 : i32, i32, i32
  }
}

</mosaic_0001>

<llo_original>
// kernel: tpu_custom_call.1
$region0: #{tpu_custom_call.1}
  #allocation0 [shape = 'u32[]', space=smem, size = 0x4, offset = 0x4, fixed_abs, tag = 'smem constant byte address 0x4 - core index']
  #allocation1 [shape = 'u32[144,128]{1,0:T(1,128)}', space=vmem, size = 0x12000, scoped, tag = 'internal scratch']
  %s0 = inlined_call_operand.hbm [shape: f32[8,16,128], index: 0, kind: input, shape index: {}]
  %s1 = inlined_call_operand.hbm [shape: f32[8,64,128], index: 1, kind: input, shape index: {}]
  %s2 = inlined_call_operand.hbm [shape: f32[16,64], index: 2, kind: input, shape index: {}]
  %s3 = inlined_call_operand.hbm [shape: f32[6,128,128], index: 3, kind: input, shape index: {}]
  %s4 = inlined_call_operand.hbm [shape: f32[9,128], index: 4, kind: input, shape index: {}]
  %s5 = inlined_call_operand.hbm [shape: f32[8,16,128], index: 5, kind: output, shape index: {}]
  %s6 = sld [smem:[#allocation0]]
  $region73: #{tpu_custom_call.1} parent=0
    _
  %s8 = ssub.s32 1, %s6
  %s9 = scalar_select 0, %s8, %s6
  $region1: #{tpu_custom_call.1} parent=0
    #allocation2 [shape = 'u8[65536]{0}', space=vmem, size = 0x10000, scoped, tag = 'input window, operand 0']
    #allocation3 [shape = 's32[2]{0}', space=sflag, size = 0x8, scoped, tag = 'scoped memory for tpu_custom_call.1']
    #allocation4 [shape = 's32[2]{0}', space=sflag, size = 0x8, scoped, tag = 'scoped memory for tpu_custom_call.1']
    #allocation5 [shape = 'u8[262144]{0}', space=vmem, size = 0x40000, scoped, tag = 'input window, operand 1']
    #allocation6 [shape = 's32[2]{0}', space=sflag, size = 0x8, scoped, tag = 'scoped memory for tpu_custom_call.1']
    #allocation7 [shape = 'u8[8192]{0}', space=vmem, size = 0x2000, scoped, tag = 'input window, operand 2, single buffered']
    #allocation8 [shape = 'u8[393216]{0}', space=vmem, size = 0x60000, scoped, tag = 'input window, operand 3, single buffered']
    #allocation9 [shape = 's32[1]{0}', space=sflag, size = 0x4, scoped, tag = 'scoped memory for tpu_custom_call.1']
    #allocation10 [shape = 'u8[8192]{0}', space=vmem, size = 0x2000, scoped, tag = 'input window, operand 4, single buffered']
    #allocation11 [shape = 'u8[65536]{0}', space=vmem, size = 0x10000, scoped, tag = 'output window, operand 0']
    %10 = vsyncpa [#allocation3], 0
    %s11 = scalar_lea.sflag [#allocation3], 1
    %12 = vsyncpa %s11, 0
    %13 = vsyncpa [#allocation6], 0
    %s14 = scalar_lea.sflag [#allocation6], 1
    %15 = vsyncpa %s14, 0
    %16 = vsyncpa [#allocation9], 0
    %17 = vsyncpa [#allocation4], 0
    %s18 = scalar_lea.sflag [#allocation4], 1
    %19 = vsyncpa %s18, 0
    loop: start=0, step=1, limit=4
    $region2: #{tpu_custom_call.1} parent=1 // loop_pre_header
      _
    $region3: #{tpu_custom_call.1} parent=1 // loop_header
      %s21 = sphi 0, %s25
      %p22 = scmp.ge.s32.totalorder %s21, 4
      %s31 = sphi 0, %s33
      %s34 = sphi 0, %s31
      %s35 = sphi 0, %s34
      %s51 = sphi 0, %s35
      %s57 = sphi 0, %s59
      %s60 = sphi 0, %s57
      %s61 = sphi 0, %s60
      %s77 = sphi 0, %s61
      %s81 = sphi 0, %s81
      %s83 = sphi 0, %s81
      %s84 = sphi 0, %s83
      %s98 = sphi 0, %s84
      %s102 = sphi 0, %s102
      %s104 = sphi 0, %s102
      %s105 = sphi 0, %s104
      %s119 = sphi 0, %s105
      %s123 = sphi 0, %s123
      %s125 = sphi 0, %s123
      %s126 = sphi 0, %s125
      %s140 = sphi 0, %s126
      %s146 = sphi 0, %s148
      %s149 = sphi 0, %s146
      %s150 = sphi 0, %s149
      %s166 = sphi 0, %s150
    $region4: #{tpu_custom_call.1} parent=1 // loop_header_branch
      %24 = sbr.rel (%p22) target = $region8
    $region5: #{tpu_custom_call.1} parent=1 // loop_body
      %s26 = ssub.s32 %s21, 1
      %s27 = ssub.s32 %s21, 2
      %s28 = sadd.s32 %s21, 1
      %s29 = ssub.s32 %s21, %s28
      %p30 = scmp.eq.s32.totalorder %s29, 0
      %s32 = sadd.s32 %s31, 1
      %s33 = scalar_select %p30, %s31, %s32
      %p36 = pneg %p30
      %p37 = scmp.eq.s32.totalorder %s21, 1
      %p38 = por %p36, %p37
      %p39 = scmp.ne.s32.totalorder %s31, %s34
      %p40 = scmp.eq.s32.totalorder %s21, 0
      %p41 = por %p39, %p40
      %p42 = scmp.ne.s32.totalorder %s31, %s34
      %p43 = scmp.eq.s32.totalorder %s26, 1
      %p44 = por %p42, %p43
      %p45 = scmp.ne.s32.totalorder %s34, %s35
      %p46 = scmp.eq.s32.totalorder %s26, 0
      %p47 = por %p45, %p46
      %p48 = scmp.ne.s32.totalorder %s34, %s35
      %p49 = scmp.eq.s32.totalorder %s27, 1
      %p50 = por %p48, %p49
      %p52 = scmp.ne.s32.totalorder %s35, %s51
      %p53 = scmp.eq.s32.totalorder %s27, 0
      %p54 = por %p52, %p53
      %s55 = ssub.s32 %s21, %s28
      %p56 = scmp.eq.s32.totalorder %s55, 0
      %s58 = sadd.s32 %s57, 1
      %s59 = scalar_select %p56, %s57, %s58
      %p62 = pneg %p56
      %p63 = scmp.eq.s32.totalorder %s21, 1
      %p64 = por %p62, %p63
      %p65 = scmp.ne.s32.totalorder %s57, %s60
      %p66 = scmp.eq.s32.totalorder %s21, 0
      %p67 = por %p65, %p66
      %p68 = scmp.ne.s32.totalorder %s57, %s60
      %p69 = scmp.eq.s32.totalorder %s26, 1
      %p70 = por %p68, %p69
      %p71 = scmp.ne.s32.totalorder %s60, %s61
      %p72 = scmp.eq.s32.totalorder %s26, 0
      %p73 = por %p71, %p72
      %p74 = scmp.ne.s32.totalorder %s60, %s61
      %p75 = scmp.eq.s32.totalorder %s27, 1
      %p76 = por %p74, %p75
      %p78 = scmp.ne.s32.totalorder %s61, %s77
      %p79 = scmp.eq.s32.totalorder %s27, 0
      %p80 = por %p78, %p79
      %s82 = sadd.s32 %s81, 1
      %p85 = scmp.eq.s32.totalorder %s21, 1
      %p86 = scmp.ne.s32.totalorder %s81, %s83
      %p87 = scmp.eq.s32.totalorder %s21, 0
      %p88 = por %p86, %p87
      %p89 = scmp.ne.s32.totalorder %s81, %s83
      %p90 = scmp.eq.s32.totalorder %s26, 1
      %p91 = por %p89, %p90
      %p92 = scmp.ne.s32.totalorder %s83, %s84
      %p93 = scmp.eq.s32.totalorder %s26, 0
      %p94 = por %p92, %p93
      %p95 = scmp.ne.s32.totalorder %s83, %s84
      %p96 = scmp.eq.s32.totalorder %s27, 1
      %p97 = por %p95, %p96
      %p99 = scmp.ne.s32.totalorder %s84, %s98
      %p100 = scmp.eq.s32.totalorder %s27, 0
      %p101 = por %p99, %p100
      %s103 = sadd.s32 %s102, 1
      %p106 = scmp.eq.s32.totalorder %s21, 1
      %p107 = scmp.ne.s32.totalorder %s102, %s104
      %p108 = scmp.eq.s32.totalorder %s21, 0
      %p109 = por %p107, %p108
      %p110 = scmp.ne.s32.totalorder %s102, %s104
      %p111 = scmp.eq.s32.totalorder %s26, 1
      %p112 = por %p110, %p111
      %p113 = scmp.ne.s32.totalorder %s104, %s105
      %p114 = scmp.eq.s32.totalorder %s26, 0
      %p115 = por %p113, %p114
      %p116 = scmp.ne.s32.totalorder %s104, %s105
      %p117 = scmp.eq.s32.totalorder %s27, 1
      %p118 = por %p116, %p117
      %p120 = scmp.ne.s32.totalorder %s105, %s119
      %p121 = scmp.eq.s32.totalorder %s27, 0
      %p122 = por %p120, %p121
      %s124 = sadd.s32 %s123, 1
      %p127 = scmp.eq.s32.totalorder %s21, 1
      %p128 = scmp.ne.s32.totalorder %s123, %s125
      %p129 = scmp.eq.s32.totalorder %s21, 0
      %p130 = por %p128, %p129
      %p131 = scmp.ne.s32.totalorder %s123, %s125
      %p132 = scmp.eq.s32.totalorder %s26, 1
      %p133 = por %p131, %p132
      %p134 = scmp.ne.s32.totalorder %s125, %s126
      %p135 = scmp.eq.s32.totalorder %s26, 0
      %p136 = por %p134, %p135
      %p137 = scmp.ne.s32.totalorder %s125, %s126
      %p138 = scmp.eq.s32.totalorder %s27, 1
      %p139 = por %p137, %p138
      %p141 = scmp.ne.s32.totalorder %s126, %s140
      %p142 = scmp.eq.s32.totalorder %s27, 0
      %p143 = por %p141, %p142
      %s144 = ssub.s32 %s21, %s28
      %p145 = scmp.eq.s32.totalorder %s144, 0
      %s147 = sadd.s32 %s146, 1
      %s148 = scalar_select %p145, %s146, %s147
      %p151 = pneg %p145
      %p152 = scmp.eq.s32.totalorder %s21, 1
      %p153 = por %p151, %p152
      %p154 = scmp.ne.s32.totalorder %s146, %s149
      %p155 = scmp.eq.s32.totalorder %s21, 0
      %p156 = por %p154, %p155
      %p157 = scmp.ne.s32.totalorder %s146, %s149
      %p158 = scmp.eq.s32.totalorder %s26, 1
      %p159 = por %p157, %p158
      %p160 = scmp.ne.s32.totalorder %s149, %s150
      %p161 = scmp.eq.s32.totalorder %s26, 0
      %p162 = por %p160, %p161
      %p163 = scmp.ne.s32.totalorder %s149, %s150
      %p164 = scmp.eq.s32.totalorder %s27, 1
      %p165 = por %p163, %p164
      %p167 = scmp.ne.s32.totalorder %s150, %s166
      %p168 = scmp.eq.s32.totalorder %s27, 0
      %p169 = por %p167, %p168
      %p170 = scmp.le.s32.totalorder 1, %s21
      %p171 = scmp.lt.s32.totalorder %s21, 3
      %p172 = pnand %p170, %p171
      %p173 = pneg %p172
      // Predicated region
      $region9: #{tpu_custom_call.1} parent=5 // pred_check
        _
      $region10: #{tpu_custom_call.1} parent=5 // pred_check_branch
        %175 = sbr.rel (%p172) target = $region12
      $region11: #{tpu_custom_call.1} parent=5 // pred_region
        %s176 = ssub.s32 %s21, 1
        // Predicated region
        $region13: #{tpu_custom_call.1} parent=11 // pred_check
          %p177 = pneg %p94
        $region14: #{tpu_custom_call.1} parent=11 // pred_check_branch
          %179 = sbr.rel (%p177) target = $region16
        $region15: #{tpu_custom_call.1} parent=11 // pred_region
          %s181 = ssub.s32 256, 256
          %182 = vsyncadd [#allocation6], %s181
          %s183 = sshll.u32 [#allocation7], 4
          %s184 = int_to_ptr.vmem [resolvable:$true] %s183
          %189 = dma.hbm_to_vmem [thread:$0]  %s2, 256, %s184, [#allocation6], 128, 128, 8
        $region16: #{tpu_custom_call.1} parent=11 // pred_fallthru
          _
        // Predicated region
        $region17: #{tpu_custom_call.1} parent=11 // pred_check
          %p190 = pneg %p115
        $region18: #{tpu_custom_call.1} parent=11 // pred_check_branch
          %192 = sbr.rel (%p190) target = $region20
        $region19: #{tpu_custom_call.1} parent=11 // pred_region
          %s194 = ssub.s32 12288, 12288
          %195 = vsyncadd [#allocation9], %s194
          %s196 = sshll.u32 [#allocation8], 4
          %s197 = int_to_ptr.vmem [resolvable:$true] %s196
          %202 = dma.hbm_to_vmem [thread:$0]  %s3, 12288, %s197, [#allocation9], 128, 128, 8
        $region20: #{tpu_custom_call.1} parent=11 // pred_fallthru
          _
        // Predicated region
        $region21: #{tpu_custom_call.1} parent=11 // pred_check
          %p203 = pneg %p136
        $region22: #{tpu_custom_call.1} parent=11 // pred_check_branch
          %205 = sbr.rel (%p203) target = $region24
        $region23: #{tpu_custom_call.1} parent=11 // pred_region
          %s207 = ssub.s32 256, 256
          %208 = vsyncadd [#allocation9], %s207
          %s209 = sshll.u32 [#allocation10], 4
          %s210 = int_to_ptr.vmem [resolvable:$true] %s209
          %215 = dma.hbm_to_vmem [thread:$0]  %s4, 256, %s210, [#allocation9], 128, 128, 8
        $region24: #{tpu_custom_call.1} parent=11 // pred_fallthru
          _
      $region12: #{tpu_custom_call.1} parent=5 // pred_fallthru
        _
      %p216 = scmp.lt.s32.totalorder %s21, 2
      // Predicated region
      $region25: #{tpu_custom_call.1} parent=5 // pred_check
        %p217 = pneg %p216
      $region26: #{tpu_custom_call.1} parent=5 // pred_check_branch
        %219 = sbr.rel (%p217) target = $region28
      $region27: #{tpu_custom_call.1} parent=5 // pred_region
        // Predicated region
        $region29: #{tpu_custom_call.1} parent=27 // pred_check
          %p220 = pneg %p41
        $region30: #{tpu_custom_call.1} parent=27 // pred_check_branch
          %222 = sbr.rel (%p220) target = $region32
        $region31: #{tpu_custom_call.1} parent=27 // pred_region
          %s223 = sand.u32 %s31, 1
          %s224 = scalar_lea.sflag [#allocation3], %s223
          %s225 = sand.u32 %s31, 1
          %s226 = smul.addr %s225, 64
          %s227 = scalar_lea.vmem [#allocation2], %s226
          %s228 = smul.u32 4, %s21
          %s230 = ssub.s32 1024, 1024
          %231 = vsyncadd %s224, %s230
          %s232 = smul.addr %s228, 2
          %s233 = smul.addr %s232, 128
          %s234 = scalar_lea.hbm %s0, %s233
          %s235 = sshll.u32 %s227, 4
          %s236 = int_to_ptr.vmem [resolvable:$true] %s235
          %241 = dma.hbm_to_vmem [thread:$0]  %s234, 1024, %s236, %s224, 128, 128, 8
        $region32: #{tpu_custom_call.1} parent=27 // pred_fallthru
          _
        // Predicated region
        $region33: #{tpu_custom_call.1} parent=27 // pred_check
          %p242 = pneg %p67
        $region34: #{tpu_custom_call.1} parent=27 // pred_check_branch
          %244 = sbr.rel (%p242) target = $region36
        $region35: #{tpu_custom_call.1} parent=27 // pred_region
          %s245 = sand.u32 %s21, 1
          %s246 = scalar_lea.sflag [#allocation6], %s245
          %s247 = sand.u32 %s57, 1
          %s248 = smul.addr %s247, 256
          %s249 = scalar_lea.vmem [#allocation5], %s248
          %s250 = smul.u32 4, %s21
          %s252 = ssub.s32 4096, 4096
          %253 = vsyncadd %s246, %s252
          %s254 = smul.addr %s250, 8
          %s255 = smul.addr %s254, 128
          %s256 = scalar_lea.hbm %s1, %s255
          %s257 = sshll.u32 %s249, 4
          %s258 = int_to_ptr.vmem [resolvable:$true] %s257
          %263 = dma.hbm_to_vmem [thread:$0]  %s256, 4096, %s258, %s246, 128, 128, 8
        $region36: #{tpu_custom_call.1} parent=27 // pred_fallthru
          _
      $region28: #{tpu_custom_call.1} parent=5 // pred_fallthru
        _
      %p264 = scmp.le.s32.totalorder 1, %s21
      %p265 = scmp.lt.s32.totalorder %s21, 3
      %p266 = pnand %p264, %p265
      %p267 = pneg %p266
      // Predicated region
      $region37: #{tpu_custom_call.1} parent=5 // pred_check
        _
      $region38: #{tpu_custom_call.1} parent=5 // pred_check_branch
        %269 = sbr.rel (%p266) target = $region40
      $region39: #{tpu_custom_call.1} parent=5 // pred_region
        %s270 = ssub.s32 %s21, 1
        %s271 = sand.u32 %s34, 1
        %s272 = scalar_lea.sflag [#allocation3], %s271
        %s273 = sand.u32 %s34, 1
        %s274 = smul.addr %s273, 64
        %s275 = scalar_lea.vmem [#allocation2], %s274
        // Predicated region
        $region41: #{tpu_custom_call.1} parent=39 // pred_check
          %p276 = pneg %p47
        $region42: #{tpu_custom_call.1} parent=39 // pred_check_branch
          %278 = sbr.rel (%p276) target = $region44
        $region43: #{tpu_custom_call.1} parent=39 // pred_region
          %279 = dma.done %s272, 1024
        $region44: #{tpu_custom_call.1} parent=39 // pred_fallthru
          _
        %s280 = sand.u32 %s26, 1
        %s281 = scalar_lea.sflag [#allocation6], %s280
        %s282 = sand.u32 %s60, 1
        %s283 = smul.addr %s282, 256
        %s284 = scalar_lea.vmem [#allocation5], %s283
        // Predicated region
        $region45: #{tpu_custom_call.1} parent=39 // pred_check
          %p285 = pneg %p73
        $region46: #{tpu_custom_call.1} parent=39 // pred_check_branch
          %287 = sbr.rel (%p285) target = $region48
        $region47: #{tpu_custom_call.1} parent=39 // pred_region
          %288 = dma.done %s281, 4096
        $region48: #{tpu_custom_call.1} parent=39 // pred_fallthru
          _
        // Predicated region
        $region49: #{tpu_custom_call.1} parent=39 // pred_check
          %p289 = pneg %p94
        $region50: #{tpu_custom_call.1} parent=39 // pred_check_branch
          %291 = sbr.rel (%p289) target = $region52
        $region51: #{tpu_custom_call.1} parent=39 // pred_region
          %292 = dma.done [#allocation6], 256
        $region52: #{tpu_custom_call.1} parent=39 // pred_fallthru
          _
        // Predicated region
        $region53: #{tpu_custom_call.1} parent=39 // pred_check
          %p293 = pneg %p115
        $region54: #{tpu_custom_call.1} parent=39 // pred_check_branch
          %295 = sbr.rel (%p293) target = $region56
        $region55: #{tpu_custom_call.1} parent=39 // pred_region
          %296 = dma.done [#allocation9], 12288
        $region56: #{tpu_custom_call.1} parent=39 // pred_fallthru
          _
        // Predicated region
        $region57: #{tpu_custom_call.1} parent=39 // pred_check
          %p297 = pneg %p136
        $region58: #{tpu_custom_call.1} parent=39 // pred_check_branch
          %299 = sbr.rel (%p297) target = $region60
        $region59: #{tpu_custom_call.1} parent=39 // pred_region
          %300 = dma.done [#allocation9], 256
        $region60: #{tpu_custom_call.1} parent=39 // pred_fallthru
          _
        %s301 = sand.u32 %s34, 1
        %s302 = scalar_lea.sflag [#allocation3], %s301
        %s303 = sand.u32 %s34, 1
        %s304 = smul.addr %s303, 64
        %s305 = scalar_lea.vmem [#allocation2], %s304
        %p306 = pneg %p47
        %p307 = pneg %p44
        %s308 = sand.u32 %s26, 1
        %s309 = scalar_lea.sflag [#allocation6], %s308
        %s310 = sand.u32 %s60, 1
        %s311 = smul.addr %s310, 256
        %s312 = scalar_lea.vmem [#allocation5], %s311
        %p313 = pneg %p73
        %p314 = pneg %p70
        %p315 = pneg %p94
        %p316 = pneg %p91
        %p317 = pneg %p115
        %p318 = pneg %p112
        %p319 = pneg %p136
        %p320 = pneg %p133
        %p321 = pneg %p162
        %p322 = pneg %p159
        %s323 = sand.u32 %s149, 1
        %s324 = scalar_lea.sflag [#allocation4], %s323
        %s325 = sand.u32 %s149, 1
        %s326 = smul.addr %s325, 64
        %s327 = scalar_lea.vmem [#allocation11], %s326
        %s328 = smul.u32 4, %s26
        %s329 = smul.u32 4, %s26
        %s330 = smul.u32 4, %s26
        %v331 = vld [vmem:[#allocation10] sm:$0x1]
        %v332 = vld [vmem:[#allocation10 + $0x1] sm:$0x1]
        %v333 = vld [vmem:[#allocation10 + $0x2] sm:$0x1]
        %v334 = vld [vmem:[#allocation10 + $0x3] sm:$0x1]
        %v335 = vld [vmem:[#allocation10 + $0x4] sm:$0x1]
        %v336 = vld [vmem:[#allocation10 + $0x5] sm:$0x1]
        %v337 = vld [vmem:[#allocation10 + $0x6] sm:$0x1]
        %v338 = vld [vmem:[#allocation10 + $0x7] sm:$0x1]
        %v339 = vld [vmem:[#allocation10 + $0x8] sm:$0x1]
        %v340 = vld [vmem:[#allocation8] sm:$0xff]
        %v341 = vld [vmem:[#allocation8 + $0x8] sm:$0xff]
        %v342 = vld [vmem:[#allocation8 + $0x10] sm:$0xff]
        %v343 = vld [vmem:[#allocation8 + $0x18] sm:$0xff]
        %v344 = vld [vmem:[#allocation8 + $0x20] sm:$0xff]
        %v345 = vld [vmem:[#allocation8 + $0x28] sm:$0xff]
        %v346 = vld [vmem:[#allocation8 + $0x30] sm:$0xff]
        %v347 = vld [vmem:[#allocation8 + $0x38] sm:$0xff]
        %v348 = vld [vmem:[#allocation8 + $0x40] sm:$0xff]
        %v349 = vld [vmem:[#allocation8 + $0x48] sm:$0xff]
        %v350 = vld [vmem:[#allocation8 + $0x50] sm:$0xff]
        %v351 = vld [vmem:[#allocation8 + $0x58] sm:$0xff]
        %v352 = vld [vmem:[#allocation8 + $0x60] sm:$0xff]
        %v353 = vld [vmem:[#allocation8 + $0x68] sm:$0xff]
        %v354 = vld [vmem:[#allocation8 + $0x70] sm:$0xff]
        %v355 = vld [vmem:[#allocation8 + $0x78] sm:$0xff]
        %s356 = scalar_lea.vmem [#allocation8], 128
        %v357 = vld [vmem:[%s356] sm:$0xff]
        %v358 = vld [vmem:[%s356 + $0x8] sm:$0xff]
        %v359 = vld [vmem:[%s356 + $0x10] sm:$0xff]
        %v360 = vld [vmem:[%s356 + $0x18] sm:$0xff]
        %v361 = vld [vmem:[%s356 + $0x20] sm:$0xff]
        %v362 = vld [vmem:[%s356 + $0x28] sm:$0xff]
        %v363 = vld [vmem:[%s356 + $0x30] sm:$0xff]
        %v364 = vld [vmem:[%s356 + $0x38] sm:$0xff]
        %v365 = vld [vmem:[%s356 + $0x40] sm:$0xff]
        %v366 = vld [vmem:[%s356 + $0x48] sm:$0xff]
        %v367 = vld [vmem:[%s356 + $0x50] sm:$0xff]
        %v368 = vld [vmem:[%s356 + $0x58] sm:$0xff]
        %v369 = vld [vmem:[%s356 + $0x60] sm:$0xff]
        %v370 = vld [vmem:[%s356 + $0x68] sm:$0xff]
        %v371 = vld [vmem:[%s356 + $0x70] sm:$0xff]
        %v372 = vld [vmem:[%s356 + $0x78] sm:$0xff]
        %s373 = scalar_lea.vmem [#allocation8], 256
        %v374 = vld [vmem:[%s373] sm:$0xff]
        %v375 = vld [vmem:[%s373 + $0x8] sm:$0xff]
        %v376 = vld [vmem:[%s373 + $0x10] sm:$0xff]
        %v377 = vld [vmem:[%s373 + $0x18] sm:$0xff]
        %v378 = vld [vmem:[%s373 + $0x20] sm:$0xff]
        %v379 = vld [vmem:[%s373 + $0x28] sm:$0xff]
        %v380 = vld [vmem:[%s373 + $0x30] sm:$0xff]
        %v381 = vld [vmem:[%s373 + $0x38] sm:$0xff]
        %v382 = vld [vmem:[%s373 + $0x40] sm:$0xff]
        %v383 = vld [vmem:[%s373 + $0x48] sm:$0xff]
        %v384 = vld [vmem:[%s373 + $0x50] sm:$0xff]
        %v385 = vld [vmem:[%s373 + $0x58] sm:$0xff]
        %v386 = vld [vmem:[%s373 + $0x60] sm:$0xff]
        %v387 = vld [vmem:[%s373 + $0x68] sm:$0xff]
        %v388 = vld [vmem:[%s373 + $0x70] sm:$0xff]
        %v389 = vld [vmem:[%s373 + $0x78] sm:$0xff]
        %s390 = scalar_lea.vmem [#allocation8], 384
        %v391 = vld [vmem:[%s390] sm:$0xff]
        %v392 = vld [vmem:[%s390 + $0x8] sm:$0xff]
        %v393 = vld [vmem:[%s390 + $0x10] sm:$0xff]
        %v394 = vld [vmem:[%s390 + $0x18] sm:$0xff]
        %v395 = vld [vmem:[%s390 + $0x20] sm:$0xff]
        %v396 = vld [vmem:[%s390 + $0x28] sm:$0xff]
        %v397 = vld [vmem:[%s390 + $0x30] sm:$0xff]
        %v398 = vld [vmem:[%s390 + $0x38] sm:$0xff]
        %v399 = vld [vmem:[%s390 + $0x40] sm:$0xff]
        %v400 = vld [vmem:[%s390 + $0x48] sm:$0xff]
        %v401 = vld [vmem:[%s390 + $0x50] sm:$0xff]
        %v402 = vld [vmem:[%s390 + $0x58] sm:$0xff]
        %v403 = vld [vmem:[%s390 + $0x60] sm:$0xff]
        %v404 = vld [vmem:[%s390 + $0x68] sm:$0xff]
        %v405 = vld [vmem:[%s390 + $0x70] sm:$0xff]
        %v406 = vld [vmem:[%s390 + $0x78] sm:$0xff]
        %s407 = scalar_lea.vmem [#allocation8], 512
        %v408 = vld [vmem:[%s407] sm:$0xff]
        %v409 = vld [vmem:[%s407 + $0x8] sm:$0xff]
        %v410 = vld [vmem:[%s407 + $0x10] sm:$0xff]
        %v411 = vld [vmem:[%s407 + $0x18] sm:$0xff]
        %v412 = vld [vmem:[%s407 + $0x20] sm:$0xff]
        %v413 = vld [vmem:[%s407 + $0x28] sm:$0xff]
        %v414 = vld [vmem:[%s407 + $0x30] sm:$0xff]
        %v415 = vld [vmem:[%s407 + $0x38] sm:$0xff]
        %v416 = vld [vmem:[%s407 + $0x40] sm:$0xff]
        %v417 = vld [vmem:[%s407 + $0x48] sm:$0xff]
        %v418 = vld [vmem:[%s407 + $0x50] sm:$0xff]
        %v419 = vld [vmem:[%s407 + $0x58] sm:$0xff]
        %v420 = vld [vmem:[%s407 + $0x60] sm:$0xff]
        %v421 = vld [vmem:[%s407 + $0x68] sm:$0xff]
        %v422 = vld [vmem:[%s407 + $0x70] sm:$0xff]
        %v423 = vld [vmem:[%s407 + $0x78] sm:$0xff]
        %s424 = scalar_lea.vmem [#allocation8], 640
        %v425 = vld [vmem:[%s424] sm:$0xff]
        %v426 = vld [vmem:[%s424 + $0x8] sm:$0xff]
        %v427 = vld [vmem:[%s424 + $0x10] sm:$0xff]
        %v428 = vld [vmem:[%s424 + $0x18] sm:$0xff]
        %v429 = vld [vmem:[%s424 + $0x20] sm:$0xff]
        %v430 = vld [vmem:[%s424 + $0x28] sm:$0xff]
        %v431 = vld [vmem:[%s424 + $0x30] sm:$0xff]
        %v432 = vld [vmem:[%s424 + $0x38] sm:$0xff]
        %v433 = vld [vmem:[%s424 + $0x40] sm:$0xff]
        %v434 = vld [vmem:[%s424 + $0x48] sm:$0xff]
        %v435 = vld [vmem:[%s424 + $0x50] sm:$0xff]
        %v436 = vld [vmem:[%s424 + $0x58] sm:$0xff]
        %v437 = vld [vmem:[%s424 + $0x60] sm:$0xff]
        %v438 = vld [vmem:[%s424 + $0x68] sm:$0xff]
        %v439 = vld [vmem:[%s424 + $0x70] sm:$0xff]
        %v440 = vld [vmem:[%s424 + $0x78] sm:$0xff]
        %v441 = vld [vmem:[#allocation7] sm:$0xff]
        %v442 = vld [vmem:[#allocation7 + $0x8] sm:$0xff]
        %v443 = vld [vmem:[%s284] sm:$0xff]
        %v444 = vld [vmem:[%s284 + $0x8] sm:$0xff]
        %v445 = vld [vmem:[%s284 + $0x10] sm:$0xff]
        %v446 = vld [vmem:[%s284 + $0x18] sm:$0xff]
        %v447 = vld [vmem:[%s284 + $0x20] sm:$0xff]
        %v448 = vld [vmem:[%s284 + $0x28] sm:$0xff]
        %v449 = vld [vmem:[%s284 + $0x30] sm:$0xff]
        %v450 = vld [vmem:[%s284 + $0x38] sm:$0xff]
        %vm451 = vcmask 523264
        %v453 = vsel %vm451, %v441, 0
        %v456 = vsel %vm451, %v442, 0
        %458 = vmatprep.subr.mxu0 0.0
        %459 = vmatpush1.msra.mxu0 0.0
        %460 = vmatprep.subr.mxu0 0.0
        %461 = vmatpush1.msra.mxu0 0.0
        %462 = vmatprep.subr.mxu0 0.0
        %463 = vmatpush1.msra.mxu0 0.0
        %464 = vmatprep.subr.mxu0 0.0
        %465 = vmatpush1.msra.mxu0 0.0
        %466 = vmatprep.subr.mxu0 0.0
        %467 = vmatpush1.msra.mxu0 0.0
        %468 = vmatprep.subr.mxu0 0.0
        %469 = vmatpush1.msra.mxu0 0.0
        %470 = vmatprep.subr.mxu0 0.0
        %471 = vmatpush1.msra.mxu0 0.0
        %472 = vmatprep.subr.mxu0 0.0
        %473 = vmatpush1.msra.mxu0 0.0
        %474 = vmatprep.subr.mxu0 0.0
        %475 = vmatpush1.msra.mxu0 %v450
        %476 = vmatprep.subr.mxu0 0.0
        %477 = vmatpush1.msra.mxu0 %v449
        %478 = vmatprep.subr.mxu0 0.0
        %479 = vmatpush1.msra.mxu0 %v448
        %480 = vmatprep.subr.mxu0 0.0
        %481 = vmatpush1.msra.mxu0 %v447
        %482 = vmatprep.subr.mxu0 0.0
        %483 = vmatpush1.msra.mxu0 %v446
        %484 = vmatprep.subr.mxu0 0.0
        %485 = vmatpush1.msra.mxu0 %v445
        %486 = vmatprep.subr.mxu0 0.0
        %487 = vmatpush1.msra.mxu0 %v444
        %488 = vmatprep.subr.mxu0 0.0
        %489 = vmatpush1.msra.mxu0 %v443
        %490 = vmatprep.subr.mxu0 0.0
        %491 = vmatpush2.msra.mxu0 0.0
        %492 = vmatprep.subr.mxu0 0.0
        %493 = vmatpush2.msra.mxu0 0.0
        %494 = vmatprep.subr.mxu0 0.0
        %495 = vmatpush2.msra.mxu0 0.0
        %496 = vmatprep.subr.mxu0 0.0
        %497 = vmatpush2.msra.mxu0 0.0
        %498 = vmatprep.subr.mxu0 0.0
        %499 = vmatpush2.msra.mxu0 0.0
        %500 = vmatprep.subr.mxu0 0.0
        %501 = vmatpush2.msra.mxu0 0.0
        %502 = vmatprep.subr.mxu0 0.0
        %503 = vmatpush2.msra.mxu0 0.0
        %504 = vmatprep.subr.mxu0 0.0
        %505 = vmatpush2.msra.mxu0 0.0
        %506 = vmatprep.subr.mxu0 0.0
        %507 = vmatpush2.msra.mxu0 0.0
        %508 = vmatprep.subr.mxu0 0.0
        %509 = vmatpush2.msra.mxu0 0.0
        %510 = vmatprep.subr.mxu0 0.0
        %511 = vmatpush2.msra.mxu0 0.0
        %512 = vmatprep.subr.mxu0 0.0
        %513 = vmatpush2.msra.mxu0 0.0
        %514 = vmatprep.subr.mxu0 0.0
        %515 = vmatpush2.msra.mxu0 0.0
        %516 = vmatprep.subr.mxu0 0.0
        %517 = vmatpush2.msra.mxu0 0.0
        %518 = vmatprep.subr.mxu0 0.0
        %519 = vmatpush2.msra.mxu0 0.0
        %520 = vmatprep.subr.mxu0 0.0
        %521 = vmatpush2.msra.mxu0 0.0
        %522 = vmatprep.mubr.f32.mxu0 0.0
        %523 = vmatmul.mubr.f32.gmra.mxu0 %v453
        %v524 = vpop.f32.mrf.mxu0
        %v525 = vadd.f32 0.0, %v524
        %v526 = vpop.f32.mrf.mxu0
        %527 = vmatprep.mubr.f32.mxu0 0.0
        %528 = vmatmul.mubr.f32.gmra.mxu0 %v456
        %v529 = vpop.f32.mrf.mxu0
        %v530 = vadd.f32 0.0, %v529
        %v531 = vpop.f32.mrf.mxu0
        %532 = vdwg.mxu0
        %s533 = scalar_lea.vmem %s284, 64 [#allocation5]
        %v534 = vld [vmem:[%s533] sm:$0xff]
        %v535 = vld [vmem:[%s533 + $0x8] sm:$0xff]
        %v536 = vld [vmem:[%s533 + $0x10] sm:$0xff]
        %v537 = vld [vmem:[%s533 + $0x18] sm:$0xff]
        %v538 = vld [vmem:[%s533 + $0x20] sm:$0xff]
        %v539 = vld [vmem:[%s533 + $0x28] sm:$0xff]
        %v540 = vld [vmem:[%s533 + $0x30] sm:$0xff]
        %v541 = vld [vmem:[%s533 + $0x38] sm:$0xff]
        %542 = vmatprep.subr.mxu0 0.0
        %543 = vmatpush1.msra.mxu0 0.0
        %544 = vmatprep.subr.mxu0 0.0
        %545 = vmatpush1.msra.mxu0 0.0
        %546 = vmatprep.subr.mxu0 0.0
        %547 = vmatpush1.msra.mxu0 0.0
        %548 = vmatprep.subr.mxu0 0.0
        %549 = vmatpush1.msra.mxu0 0.0
        %550 = vmatprep.subr.mxu0 0.0
        %551 = vmatpush1.msra.mxu0 0.0
        %552 = vmatprep.subr.mxu0 0.0
        %553 = vmatpush1.msra.mxu0 0.0
        %554 = vmatprep.subr.mxu0 0.0
        %555 = vmatpush1.msra.mxu0 0.0
        %556 = vmatprep.subr.mxu0 0.0
        %557 = vmatpush1.msra.mxu0 0.0
        %558 = vmatprep.subr.mxu0 0.0
        %559 = vmatpush1.msra.mxu0 %v541
        %560 = vmatprep.subr.mxu0 0.0
        %561 = vmatpush1.msra.mxu0 %v540
        %562 = vmatprep.subr.mxu0 0.0
        %563 = vmatpush1.msra.mxu0 %v539
        %564 = vmatprep.subr.mxu0 0.0
        %565 = vmatpush1.msra.mxu0 %v538
        %566 = vmatprep.subr.mxu0 0.0
        %567 = vmatpush1.msra.mxu0 %v537
        %568 = vmatprep.subr.mxu0 0.0
        %569 = vmatpush1.msra.mxu0 %v536
        %570 = vmatprep.subr.mxu0 0.0
        %571 = vmatpush1.msra.mxu0 %v535
        %572 = vmatprep.subr.mxu0 0.0
        %573 = vmatpush1.msra.mxu0 %v534
        %574 = vmatprep.subr.mxu0 0.0
        %575 = vmatpush2.msra.mxu0 0.0
        %576 = vmatprep.subr.mxu0 0.0
        %577 = vmatpush2.msra.mxu0 0.0
        %578 = vmatprep.subr.mxu0 0.0
        %579 = vmatpush2.msra.mxu0 0.0
        %580 = vmatprep.subr.mxu0 0.0
        %581 = vmatpush2.msra.mxu0 0.0
        %582 = vmatprep.subr.mxu0 0.0
        %583 = vmatpush2.msra.mxu0 0.0
        %584 = vmatprep.subr.mxu0 0.0
        %585 = vmatpush2.msra.mxu0 0.0
        %586 = vmatprep.subr.mxu0 0.0
        %587 = vmatpush2.msra.mxu0 0.0
        %588 = vmatprep.subr.mxu0 0.0
        %589 = vmatpush2.msra.mxu0 0.0
        %590 = vmatprep.subr.mxu0 0.0
        %591 = vmatpush2.msra.mxu0 0.0
        %592 = vmatprep.subr.mxu0 0.0
        %593 = vmatpush2.msra.mxu0 0.0
        %594 = vmatprep.subr.mxu0 0.0
        %595 = vmatpush2.msra.mxu0 0.0
        %596 = vmatprep.subr.mxu0 0.0
        %597 = vmatpush2.msra.mxu0 0.0
        %598 = vmatprep.subr.mxu0 0.0
        %599 = vmatpush2.msra.mxu0 0.0
        %600 = vmatprep.subr.mxu0 0.0
        %601 = vmatpush2.msra.mxu0 0.0
        %602 = vmatprep.subr.mxu0 0.0
        %603 = vmatpush2.msra.mxu0 0.0
        %604 = vmatprep.subr.mxu0 0.0
        %605 = vmatpush2.msra.mxu0 0.0
        %606 = vmatprep.mubr.f32.mxu0 0.0
        %607 = vmatmul.mubr.f32.gmra.mxu0 %v453
        %v608 = vpop.f32.mrf.mxu0
        %v609 = vadd.f32 0.0, %v608
        %v610 = vpop.f32.mrf.mxu0
        %611 = vmatprep.mubr.f32.mxu0 0.0
        %612 = vmatmul.mubr.f32.gmra.mxu0 %v456
        %v613 = vpop.f32.mrf.mxu0
        %v614 = vadd.f32 0.0, %v613
        %v615 = vpop.f32.mrf.mxu0
        %616 = vdwg.mxu0
        %s617 = scalar_lea.vmem %s284, 128 [#allocation5]
        %v618 = vld [vmem:[%s617] sm:$0xff]
        %v619 = vld [vmem:[%s617 + $0x8] sm:$0xff]
        %v620 = vld [vmem:[%s617 + $0x10] sm:$0xff]
        %v621 = vld [vmem:[%s617 + $0x18] sm:$0xff]
        %v622 = vld [vmem:[%s617 + $0x20] sm:$0xff]
        %v623 = vld [vmem:[%s617 + $0x28] sm:$0xff]
        %v624 = vld [vmem:[%s617 + $0x30] sm:$0xff]
        %v625 = vld [vmem:[%s617 + $0x38] sm:$0xff]
        %626 = vmatprep.subr.mxu0 0.0
        %627 = vmatpush1.msra.mxu0 0.0
        %628 = vmatprep.subr.mxu0 0.0
        %629 = vmatpush1.msra.mxu0 0.0
        %630 = vmatprep.subr.mxu0 0.0
        %631 = vmatpush1.msra.mxu0 0.0
        %632 = vmatprep.subr.mxu0 0.0
        %633 = vmatpush1.msra.mxu0 0.0
        %634 = vmatprep.subr.mxu0 0.0
        %635 = vmatpush1.msra.mxu0 0.0
        %636 = vmatprep.subr.mxu0 0.0
        %637 = vmatpush1.msra.mxu0 0.0
        %638 = vmatprep.subr.mxu0 0.0
        %639 = vmatpush1.msra.mxu0 0.0
        %640 = vmatprep.subr.mxu0 0.0
        %641 = vmatpush1.msra.mxu0 0.0
        %642 = vmatprep.subr.mxu0 0.0
        %643 = vmatpush1.msra.mxu0 %v625
        %644 = vmatprep.subr.mxu0 0.0
        %645 = vmatpush1.msra.mxu0 %v624
        %646 = vmatprep.subr.mxu0 0.0
        %647 = vmatpush1.msra.mxu0 %v623
        %648 = vmatprep.subr.mxu0 0.0
        %649 = vmatpush1.msra.mxu0 %v622
        %650 = vmatprep.subr.mxu0 0.0
        %651 = vmatpush1.msra.mxu0 %v621
        %652 = vmatprep.subr.mxu0 0.0
        %653 = vmatpush1.msra.mxu0 %v620
        %654 = vmatprep.subr.mxu0 0.0
        %655 = vmatpush1.msra.mxu0 %v619
        %656 = vmatprep.subr.mxu0 0.0
        %657 = vmatpush1.msra.mxu0 %v618
        %658 = vmatprep.subr.mxu0 0.0
        %659 = vmatpush2.msra.mxu0 0.0
        %660 = vmatprep.subr.mxu0 0.0
        %661 = vmatpush2.msra.mxu0 0.0
        %662 = vmatprep.subr.mxu0 0.0
        %663 = vmatpush2.msra.mxu0 0.0
        %664 = vmatprep.subr.mxu0 0.0
        %665 = vmatpush2.msra.mxu0 0.0
        %666 = vmatprep.subr.mxu0 0.0
        %667 = vmatpush2.msra.mxu0 0.0
        %668 = vmatprep.subr.mxu0 0.0
        %669 = vmatpush2.msra.mxu0 0.0
        %670 = vmatprep.subr.mxu0 0.0
        %671 = vmatpush2.msra.mxu0 0.0
        %672 = vmatprep.subr.mxu0 0.0
        %673 = vmatpush2.msra.mxu0 0.0
        %674 = vmatprep.subr.mxu0 0.0
        %675 = vmatpush2.msra.mxu0 0.0
        %676 = vmatprep.subr.mxu0 0.0
        %677 = vmatpush2.msra.mxu0 0.0
        %678 = vmatprep.subr.mxu0 0.0
        %679 = vmatpush2.msra.mxu0 0.0
        %680 = vmatprep.subr.mxu0 0.0
        %681 = vmatpush2.msra.mxu0 0.0
        %682 = vmatprep.subr.mxu0 0.0
        %683 = vmatpush2.msra.mxu0 0.0
        %684 = vmatprep.subr.mxu0 0.0
        %685 = vmatpush2.msra.mxu0 0.0
        %686 = vmatprep.subr.mxu0 0.0
        %687 = vmatpush2.msra.mxu0 0.0
        %688 = vmatprep.subr.mxu0 0.0
        %689 = vmatpush2.msra.mxu0 0.0
        %690 = vmatprep.mubr.f32.mxu0 0.0
        %691 = vmatmul.mubr.f32.gmra.mxu0 %v453
        %v692 = vpop.f32.mrf.mxu0
        %v693 = vadd.f32 0.0, %v692
        %v694 = vpop.f32.mrf.mxu0
        %695 = vmatprep.mubr.f32.mxu0 0.0
        %696 = vmatmul.mubr.f32.gmra.mxu0 %v456
        %v697 = vpop.f32.mrf.mxu0
        %v698 = vadd.f32 0.0, %v697
        %v699 = vpop.f32.mrf.mxu0
        %700 = vdwg.mxu0
        %s701 = scalar_lea.vmem %s284, 192 [#allocation5]
        %v702 = vld [vmem:[%s701] sm:$0xff]
        %v703 = vld [vmem:[%s701 + $0x8] sm:$0xff]
        %v704 = vld [vmem:[%s701 + $0x10] sm:$0xff]
        %v705 = vld [vmem:[%s701 + $0x18] sm:$0xff]
        %v706 = vld [vmem:[%s701 + $0x20] sm:$0xff]
        %v707 = vld [vmem:[%s701 + $0x28] sm:$0xff]
        %v708 = vld [vmem:[%s701 + $0x30] sm:$0xff]
        %v709 = vld [vmem:[%s701 + $0x38] sm:$0xff]
        %710 = vmatprep.subr.mxu0 0.0
        %711 = vmatpush1.msra.mxu0 0.0
        %712 = vmatprep.subr.mxu0 0.0
        %713 = vmatpush1.msra.mxu0 0.0
        %714 = vmatprep.subr.mxu0 0.0
        %715 = vmatpush1.msra.mxu0 0.0
        %716 = vmatprep.subr.mxu0 0.0
        %717 = vmatpush1.msra.mxu0 0.0
        %718 = vmatprep.subr.mxu0 0.0
        %719 = vmatpush1.msra.mxu0 0.0
        %720 = vmatprep.subr.mxu0 0.0
        %721 = vmatpush1.msra.mxu0 0.0
        %722 = vmatprep.subr.mxu0 0.0
        %723 = vmatpush1.msra.mxu0 0.0
        %724 = vmatprep.subr.mxu0 0.0
        %725 = vmatpush1.msra.mxu0 0.0
        %726 = vmatprep.subr.mxu0 0.0
        %727 = vmatpush1.msra.mxu0 %v709
        %728 = vmatprep.subr.mxu0 0.0
        %729 = vmatpush1.msra.mxu0 %v708
        %730 = vmatprep.subr.mxu0 0.0
        %731 = vmatpush1.msra.mxu0 %v707
        %732 = vmatprep.subr.mxu0 0.0
        %733 = vmatpush1.msra.mxu0 %v706
        %734 = vmatprep.subr.mxu0 0.0
        %735 = vmatpush1.msra.mxu0 %v705
        %736 = vmatprep.subr.mxu0 0.0
        %737 = vmatpush1.msra.mxu0 %v704
        %738 = vmatprep.subr.mxu0 0.0
        %739 = vmatpush1.msra.mxu0 %v703
        %740 = vmatprep.subr.mxu0 0.0
        %741 = vmatpush1.msra.mxu0 %v702
        %742 = vmatprep.subr.mxu0 0.0
        %743 = vmatpush2.msra.mxu0 0.0
        %744 = vmatprep.subr.mxu0 0.0
        %745 = vmatpush2.msra.mxu0 0.0
        %746 = vmatprep.subr.mxu0 0.0
        %747 = vmatpush2.msra.mxu0 0.0
        %748 = vmatprep.subr.mxu0 0.0
        %749 = vmatpush2.msra.mxu0 0.0
        %750 = vmatprep.subr.mxu0 0.0
        %751 = vmatpush2.msra.mxu0 0.0
        %752 = vmatprep.subr.mxu0 0.0
        %753 = vmatpush2.msra.mxu0 0.0
        %754 = vmatprep.subr.mxu0 0.0
        %755 = vmatpush2.msra.mxu0 0.0
        %756 = vmatprep.subr.mxu0 0.0
        %757 = vmatpush2.msra.mxu0 0.0
        %758 = vmatprep.subr.mxu0 0.0
        %759 = vmatpush2.msra.mxu0 0.0
        %760 = vmatprep.subr.mxu0 0.0
        %761 = vmatpush2.msra.mxu0 0.0
        %762 = vmatprep.subr.mxu0 0.0
        %763 = vmatpush2.msra.mxu0 0.0
        %764 = vmatprep.subr.mxu0 0.0
        %765 = vmatpush2.msra.mxu0 0.0
        %766 = vmatprep.subr.mxu0 0.0
        %767 = vmatpush2.msra.mxu0 0.0
        %768 = vmatprep.subr.mxu0 0.0
        %769 = vmatpush2.msra.mxu0 0.0
        %770 = vmatprep.subr.mxu0 0.0
        %771 = vmatpush2.msra.mxu0 0.0
        %772 = vmatprep.subr.mxu0 0.0
        %773 = vmatpush2.msra.mxu0 0.0
        %774 = vmatprep.mubr.f32.mxu0 0.0
        %775 = vmatmul.mubr.f32.gmra.mxu0 %v453
        %v776 = vpop.f32.mrf.mxu0
        %v777 = vadd.f32 0.0, %v776
        %v778 = vpop.f32.mrf.mxu0
        %779 = vmatprep.mubr.f32.mxu0 0.0
        %780 = vmatmul.mubr.f32.gmra.mxu0 %v456
        %v781 = vpop.f32.mrf.mxu0
        %v782 = vadd.f32 0.0, %v781
        %v783 = vpop.f32.mrf.mxu0
        %784 = vdwg.mxu0
        %v785 = vlaneseq
        %v786 = vshrl.u32 %v785, 7
        %v787 = vsub.s32 0, %v786
        %v788 = vrot.slane %v331, %v787
        %789 = vmatprep.subr.mxu0 0.0
        %790 = vmatpush1.msra.mxu0 %v355
        %791 = vmatprep.subr.mxu0 0.0
        %792 = vmatpush1.msra.mxu0 %v354
        %793 = vmatprep.subr.mxu0 0.0
        %794 = vmatpush1.msra.mxu0 %v353
        %795 = vmatprep.subr.mxu0 0.0
        %796 = vmatpush1.msra.mxu0 %v352
        %797 = vmatprep.subr.mxu0 0.0
        %798 = vmatpush1.msra.mxu0 %v351
        %799 = vmatprep.subr.mxu0 0.0
        %800 = vmatpush1.msra.mxu0 %v350
        %801 = vmatprep.subr.mxu0 0.0
        %802 = vmatpush1.msra.mxu0 %v349
        %803 = vmatprep.subr.mxu0 0.0
        %804 = vmatpush1.msra.mxu0 %v348
        %805 = vmatprep.subr.mxu0 0.0
        %806 = vmatpush1.msra.mxu0 %v347
        %807 = vmatprep.subr.mxu0 0.0
        %808 = vmatpush1.msra.mxu0 %v346
        %809 = vmatprep.subr.mxu0 0.0
        %810 = vmatpush1.msra.mxu0 %v345
        %811 = vmatprep.subr.mxu0 0.0
        %812 = vmatpush1.msra.mxu0 %v344
        %813 = vmatprep.subr.mxu0 0.0
        %814 = vmatpush1.msra.mxu0 %v343
        %815 = vmatprep.subr.mxu0 0.0
        %816 = vmatpush1.msra.mxu0 %v342
        %817 = vmatprep.subr.mxu0 0.0
        %818 = vmatpush1.msra.mxu0 %v341
        %819 = vmatprep.subr.mxu0 0.0
        %820 = vmatpush1.msra.mxu0 %v340
        %821 = vmatprep.subr.mxu0 0.0
        %822 = vmatpush2.msra.mxu0 0.0
        %823 = vmatprep.subr.mxu0 0.0
        %824 = vmatpush2.msra.mxu0 0.0
        %825 = vmatprep.subr.mxu0 0.0
        %826 = vmatpush2.msra.mxu0 0.0
        %827 = vmatprep.subr.mxu0 0.0
        %828 = vmatpush2.msra.mxu0 0.0
        %829 = vmatprep.subr.mxu0 0.0
        %830 = vmatpush2.msra.mxu0 0.0
        %831 = vmatprep.subr.mxu0 0.0
        %832 = vmatpush2.msra.mxu0 0.0
        %833 = vmatprep.subr.mxu0 0.0
        %834 = vmatpush2.msra.mxu0 0.0
        %835 = vmatprep.subr.mxu0 0.0
        %836 = vmatpush2.msra.mxu0 0.0
        %837 = vmatprep.subr.mxu0 0.0
        %838 = vmatpush2.msra.mxu0 0.0
        %839 = vmatprep.subr.mxu0 0.0
        %840 = vmatpush2.msra.mxu0 0.0
        %841 = vmatprep.subr.mxu0 0.0
        %842 = vmatpush2.msra.mxu0 0.0
        %843 = vmatprep.subr.mxu0 0.0
        %844 = vmatpush2.msra.mxu0 0.0
        %845 = vmatprep.subr.mxu0 0.0
        %846 = vmatpush2.msra.mxu0 0.0
        %847 = vmatprep.subr.mxu0 0.0
        %848 = vmatpush2.msra.mxu0 0.0
        %849 = vmatprep.subr.mxu0 0.0
        %850 = vmatpush2.msra.mxu0 0.0
        %851 = vmatprep.subr.mxu0 0.0
        %852 = vmatpush2.msra.mxu0 0.0
        %853 = vmatprep.mubr.f32.mxu0 0.0
        %854 = vmatmul.mubr.f32.gmra.mxu0 %v525
        %v855 = vpop.f32.mrf.mxu0
        %v856 = vadd.f32 %v788, %v855
        %v857 = vpop.f32.mrf.mxu0
        %858 = vmatprep.mubr.f32.mxu0 0.0
        %859 = vmatmul.mubr.f32.gmra.mxu0 %v530
        %v860 = vpop.f32.mrf.mxu0
        %v861 = vadd.f32 %v788, %v860
        %v862 = vpop.f32.mrf.mxu0
        %863 = vmatprep.mubr.f32.mxu0 0.0
        %864 = vmatmul.mubr.f32.gmra.mxu0 %v609
        %v865 = vpop.f32.mrf.mxu0
        %v866 = vadd.f32 %v788, %v865
        %v867 = vpop.f32.mrf.mxu0
        %868 = vmatprep.mubr.f32.mxu0 0.0
        %869 = vmatmul.mubr.f32.gmra.mxu0 %v614
        %v870 = vpop.f32.mrf.mxu0
        %v871 = vadd.f32 %v788, %v870
        %v872 = vpop.f32.mrf.mxu0
        %873 = vmatprep.mubr.f32.mxu0 0.0
        %874 = vmatmul.mubr.f32.gmra.mxu0 %v693
        %v875 = vpop.f32.mrf.mxu0
        %v876 = vadd.f32 %v788, %v875
        %v877 = vpop.f32.mrf.mxu0
        %878 = vmatprep.mubr.f32.mxu0 0.0
        %879 = vmatmul.mubr.f32.gmra.mxu0 %v698
        %v880 = vpop.f32.mrf.mxu0
        %v881 = vadd.f32 %v788, %v880
        %v882 = vpop.f32.mrf.mxu0
        %883 = vmatprep.mubr.f32.mxu0 0.0
        %884 = vmatmul.mubr.f32.gmra.mxu0 %v777
        %v885 = vpop.f32.mrf.mxu0
        %v886 = vadd.f32 %v788, %v885
        %v887 = vpop.f32.mrf.mxu0
        %888 = vmatprep.mubr.f32.mxu0 0.0
        %889 = vmatmul.mubr.f32.gmra.mxu0 %v782
        %v890 = vpop.f32.mrf.mxu0
        %v891 = vadd.f32 %v788, %v890
        %v892 = vpop.f32.mrf.mxu0
        %893 = vdwg.mxu0
        %894 = vadd.xlane.f32.xlu0 %v856
        %v895 = vpop.xlane.xlu0 %894
        %896 = vadd.xlane.f32.xlu0 %v861
        %v897 = vpop.xlane.xlu0 %896
        %898 = vadd.xlane.f32.xlu0 %v866
        %v899 = vpop.xlane.xlu0 %898
        %900 = vadd.xlane.f32.xlu0 %v871
        %v901 = vpop.xlane.xlu0 %900
        %902 = vadd.xlane.f32.xlu0 %v876
        %v903 = vpop.xlane.xlu0 %902
        %904 = vadd.xlane.f32.xlu0 %v881
        %v905 = vpop.xlane.xlu0 %904
        %906 = vadd.xlane.f32.xlu0 %v886
        %v907 = vpop.xlane.xlu0 %906
        %908 = vadd.xlane.f32.xlu0 %v891
        %v909 = vpop.xlane.xlu0 %908
        %v910 = vrcp.pop 128.0
        %v911 = vmul.f32 %v895, %v910
        %v912 = vmul.f32 %v897, %v910
        %v913 = vmul.f32 %v899, %v910
        %v914 = vmul.f32 %v901, %v910
        %v915 = vmul.f32 %v903, %v910
        %v916 = vmul.f32 %v905, %v910
        %v917 = vmul.f32 %v907, %v910
        %v918 = vmul.f32 %v909, %v910
        %v919 = vmul.f32 %v856, %v856
        %v920 = vmul.f32 %v861, %v861
        %v921 = vmul.f32 %v866, %v866
        %v922 = vmul.f32 %v871, %v871
        %v923 = vmul.f32 %v876, %v876
        %v924 = vmul.f32 %v881, %v881
        %v925 = vmul.f32 %v886, %v886
        %v926 = vmul.f32 %v891, %v891
        %927 = vadd.xlane.f32.xlu0 %v919
        %v928 = vpop.xlane.xlu0 %927
        %929 = vadd.xlane.f32.xlu0 %v920
        %v930 = vpop.xlane.xlu0 %929
        %931 = vadd.xlane.f32.xlu0 %v921
        %v932 = vpop.xlane.xlu0 %931
        %933 = vadd.xlane.f32.xlu0 %v922
        %v934 = vpop.xlane.xlu0 %933
        %935 = vadd.xlane.f32.xlu0 %v923
        %v936 = vpop.xlane.xlu0 %935
        %937 = vadd.xlane.f32.xlu0 %v924
        %v938 = vpop.xlane.xlu0 %937
        %939 = vadd.xlane.f32.xlu0 %v925
        %v940 = vpop.xlane.xlu0 %939
        %941 = vadd.xlane.f32.xlu0 %v926
        %v942 = vpop.xlane.xlu0 %941
        %v943 = vmul.f32 %v928, %v910
        %v944 = vmul.f32 %v930, %v910
        %v945 = vmul.f32 %v932, %v910
        %v946 = vmul.f32 %v934, %v910
        %v947 = vmul.f32 %v936, %v910
        %v948 = vmul.f32 %v938, %v910
        %v949 = vmul.f32 %v940, %v910
        %v950 = vmul.f32 %v942, %v910
        %v951 = vmul.f32 %v911, %v911
        %v952 = vmul.f32 %v912, %v912
        %v953 = vmul.f32 %v913, %v913
        %v954 = vmul.f32 %v914, %v914
        %v955 = vmul.f32 %v915, %v915
        %v956 = vmul.f32 %v916, %v916
        %v957 = vmul.f32 %v917, %v917
        %v958 = vmul.f32 %v918, %v918
        %v959 = vsub.f32 %v943, %v951
        %v960 = vsub.f32 %v944, %v952
        %v961 = vsub.f32 %v945, %v953
        %v962 = vsub.f32 %v946, %v954
        %v963 = vsub.f32 %v947, %v955
        %v964 = vsub.f32 %v948, %v956
        %v965 = vsub.f32 %v949, %v957
        %v966 = vsub.f32 %v950, %v958
        %v967 = vadd.f32 %v959, 1e-06
        %v968 = vadd.f32 %v960, 1e-06
        %v969 = vadd.f32 %v961, 1e-06
        %v970 = vadd.f32 %v962, 1e-06
        %v971 = vadd.f32 %v963, 1e-06
        %v972 = vadd.f32 %v964, 1e-06
        %v973 = vadd.f32 %v965, 1e-06
        %v974 = vadd.f32 %v966, 1e-06
        %v975 = vrsqrt.pop %v967
        %v976 = vrsqrt.pop %v968
        %v977 = vrsqrt.pop %v969
        %v978 = vrsqrt.pop %v970
        %v979 = vrsqrt.pop %v971
        %v980 = vrsqrt.pop %v972
        %v981 = vrsqrt.pop %v973
        %v982 = vrsqrt.pop %v974
        %v983 = vsub.f32 %v856, %v911
        %v984 = vsub.f32 %v861, %v912
        %v985 = vsub.f32 %v866, %v913
        %v986 = vsub.f32 %v871, %v914
        %v987 = vsub.f32 %v876, %v915
        %v988 = vsub.f32 %v881, %v916
        %v989 = vsub.f32 %v886, %v917
        %v990 = vsub.f32 %v891, %v918
        %v991 = vmul.f32 %v983, %v975
        %v992 = vmul.f32 %v984, %v976
        %v993 = vmul.f32 %v985, %v977
        %v994 = vmul.f32 %v986, %v978
        %v995 = vmul.f32 %v987, %v979
        %v996 = vmul.f32 %v988, %v980
        %v997 = vmul.f32 %v989, %v981
        %v998 = vmul.f32 %v990, %v982
        %v999 = vlaneseq
        %v1000 = vshrl.u32 %v999, 7
        %v1001 = vsub.s32 0, %v1000
        %v1002 = vrot.slane %v332, %v1001
        %v1003 = vmul.f32 %v991, %v1002
        %v1004 = vmul.f32 %v992, %v1002
        %v1005 = vmul.f32 %v993, %v1002
        %v1006 = vmul.f32 %v994, %v1002
        %v1007 = vmul.f32 %v995, %v1002
        %v1008 = vmul.f32 %v996, %v1002
        %v1009 = vmul.f32 %v997, %v1002
        %v1010 = vmul.f32 %v998, %v1002
        %v1011 = vlaneseq
        %v1012 = vshrl.u32 %v1011, 7
        %v1013 = vsub.s32 0, %v1012
        %v1014 = vrot.slane %v333, %v1013
        %v1015 = vadd.f32 %v1003, %v1014
        %v1016 = vadd.f32 %v1004, %v1014
        %v1017 = vadd.f32 %v1005, %v1014
        %v1018 = vadd.f32 %v1006, %v1014
        %v1019 = vadd.f32 %v1007, %v1014
        %v1020 = vadd.f32 %v1008, %v1014
        %v1021 = vadd.f32 %v1009, %v1014
        %v1022 = vadd.f32 %v1010, %v1014
        %v1023 = vmax.f32 %v1015, 0.0
        %v1024 = vmax.f32 %v1016, 0.0
        %v1025 = vmax.f32 %v1017, 0.0
        %v1026 = vmax.f32 %v1018, 0.0
        %v1027 = vmax.f32 %v1019, 0.0
        %v1028 = vmax.f32 %v1020, 0.0
        %v1029 = vmax.f32 %v1021, 0.0
        %v1030 = vmax.f32 %v1022, 0.0
        %v1031 = vlaneseq
        %v1032 = vshrl.u32 %v1031, 7
        %v1033 = vsub.s32 0, %v1032
        %v1034 = vrot.slane %v334, %v1033
        %1035 = vmatprep.subr.mxu0 0.0
        %1036 = vmatpush1.msra.mxu0 %v372
        %1037 = vmatprep.subr.mxu0 0.0
        %1038 = vmatpush1.msra.mxu0 %v371
        %1039 = vmatprep.subr.mxu0 0.0
        %1040 = vmatpush1.msra.mxu0 %v370
        %1041 = vmatprep.subr.mxu0 0.0
        %1042 = vmatpush1.msra.mxu0 %v369
        %1043 = vmatprep.subr.mxu0 0.0
        %1044 = vmatpush1.msra.mxu0 %v368
        %1045 = vmatprep.subr.mxu0 0.0
        %1046 = vmatpush1.msra.mxu0 %v367
        %1047 = vmatprep.subr.mxu0 0.0
        %1048 = vmatpush1.msra.mxu0 %v366
        %1049 = vmatprep.subr.mxu0 0.0
        %1050 = vmatpush1.msra.mxu0 %v365
        %1051 = vmatprep.subr.mxu0 0.0
        %1052 = vmatpush1.msra.mxu0 %v364
        %1053 = vmatprep.subr.mxu0 0.0
        %1054 = vmatpush1.msra.mxu0 %v363
        %1055 = vmatprep.subr.mxu0 0.0
        %1056 = vmatpush1.msra.mxu0 %v362
        %1057 = vmatprep.subr.mxu0 0.0
        %1058 = vmatpush1.msra.mxu0 %v361
        %1059 = vmatprep.subr.mxu0 0.0
        %1060 = vmatpush1.msra.mxu0 %v360
        %1061 = vmatprep.subr.mxu0 0.0
        %1062 = vmatpush1.msra.mxu0 %v359
        %1063 = vmatprep.subr.mxu0 0.0
        %1064 = vmatpush1.msra.mxu0 %v358
        %1065 = vmatprep.subr.mxu0 0.0
        %1066 = vmatpush1.msra.mxu0 %v357
        %1067 = vmatprep.subr.mxu0 0.0
        %1068 = vmatpush2.msra.mxu0 0.0
        %1069 = vmatprep.subr.mxu0 0.0
        %1070 = vmatpush2.msra.mxu0 0.0
        %1071 = vmatprep.subr.mxu0 0.0
        %1072 = vmatpush2.msra.mxu0 0.0
        %1073 = vmatprep.subr.mxu0 0.0
        %1074 = vmatpush2.msra.mxu0 0.0
        %1075 = vmatprep.subr.mxu0 0.0
        %1076 = vmatpush2.msra.mxu0 0.0
        %1077 = vmatprep.subr.mxu0 0.0
        %1078 = vmatpush2.msra.mxu0 0.0
        %1079 = vmatprep.subr.mxu0 0.0
        %1080 = vmatpush2.msra.mxu0 0.0
        %1081 = vmatprep.subr.mxu0 0.0
        %1082 = vmatpush2.msra.mxu0 0.0
        %1083 = vmatprep.subr.mxu0 0.0
        %1084 = vmatpush2.msra.mxu0 0.0
        %1085 = vmatprep.subr.mxu0 0.0
        %1086 = vmatpush2.msra.mxu0 0.0
        %1087 = vmatprep.subr.mxu0 0.0
        %1088 = vmatpush2.msra.mxu0 0.0
        %1089 = vmatprep.subr.mxu0 0.0
        %1090 = vmatpush2.msra.mxu0 0.0
        %1091 = vmatprep.subr.mxu0 0.0
        %1092 = vmatpush2.msra.mxu0 0.0
        %1093 = vmatprep.subr.mxu0 0.0
        %1094 = vmatpush2.msra.mxu0 0.0
        %1095 = vmatprep.subr.mxu0 0.0
        %1096 = vmatpush2.msra.mxu0 0.0
        %1097 = vmatprep.subr.mxu0 0.0
        %1098 = vmatpush2.msra.mxu0 0.0
        %1099 = vmatprep.mubr.f32.mxu0 0.0
        %1100 = vmatmul.mubr.f32.gmra.mxu0 %v1023
        %v1101 = vpop.f32.mrf.mxu0
        %v1102 = vadd.f32 %v1034, %v1101
        %v1103 = vpop.f32.mrf.mxu0
        %1104 = vmatprep.mubr.f32.mxu0 0.0
        %1105 = vmatmul.mubr.f32.gmra.mxu0 %v1024
        %v1106 = vpop.f32.mrf.mxu0
        %v1107 = vadd.f32 %v1034, %v1106
        %v1108 = vpop.f32.mrf.mxu0
        %1109 = vmatprep.mubr.f32.mxu0 0.0
        %1110 = vmatmul.mubr.f32.gmra.mxu0 %v1025
        %v1111 = vpop.f32.mrf.mxu0
        %v1112 = vadd.f32 %v1034, %v1111
        %v1113 = vpop.f32.mrf.mxu0
        %1114 = vmatprep.mubr.f32.mxu0 0.0
        %1115 = vmatmul.mubr.f32.gmra.mxu0 %v1026
        %v1116 = vpop.f32.mrf.mxu0
        %v1117 = vadd.f32 %v1034, %v1116
        %v1118 = vpop.f32.mrf.mxu0
        %1119 = vmatprep.mubr.f32.mxu0 0.0
        %1120 = vmatmul.mubr.f32.gmra.mxu0 %v1027
        %v1121 = vpop.f32.mrf.mxu0
        %v1122 = vadd.f32 %v1034, %v1121
        %v1123 = vpop.f32.mrf.mxu0
        %1124 = vmatprep.mubr.f32.mxu0 0.0
        %1125 = vmatmul.mubr.f32.gmra.mxu0 %v1028
        %v1126 = vpop.f32.mrf.mxu0
        %v1127 = vadd.f32 %v1034, %v1126
        %v1128 = vpop.f32.mrf.mxu0
        %1129 = vmatprep.mubr.f32.mxu0 0.0
        %1130 = vmatmul.mubr.f32.gmra.mxu0 %v1029
        %v1131 = vpop.f32.mrf.mxu0
        %v1132 = vadd.f32 %v1034, %v1131
        %v1133 = vpop.f32.mrf.mxu0
        %1134 = vmatprep.mubr.f32.mxu0 0.0
        %1135 = vmatmul.mubr.f32.gmra.mxu0 %v1030
        %v1136 = vpop.f32.mrf.mxu0
        %v1137 = vadd.f32 %v1034, %v1136
        %v1138 = vpop.f32.mrf.mxu0
        %1139 = vdwg.mxu0
        %v1140 = vmax.f32 %v1102, 0.0
        %v1141 = vmax.f32 %v1107, 0.0
        %v1142 = vmax.f32 %v1112, 0.0
        %v1143 = vmax.f32 %v1117, 0.0
        %v1144 = vmax.f32 %v1122, 0.0
        %v1145 = vmax.f32 %v1127, 0.0
        %v1146 = vmax.f32 %v1132, 0.0
        %v1147 = vmax.f32 %v1137, 0.0
        %v1148 = vlaneseq
        %v1149 = vshrl.u32 %v1148, 7
        %v1150 = vsub.s32 0, %v1149
        %v1151 = vrot.slane %v335, %v1150
        %1152 = vmatprep.subr.mxu0 0.0
        %1153 = vmatpush1.msra.mxu0 %v389
        %1154 = vmatprep.subr.mxu0 0.0
        %1155 = vmatpush1.msra.mxu0 %v388
        %1156 = vmatprep.subr.mxu0 0.0
        %1157 = vmatpush1.msra.mxu0 %v387
        %1158 = vmatprep.subr.mxu0 0.0
        %1159 = vmatpush1.msra.mxu0 %v386
        %1160 = vmatprep.subr.mxu0 0.0
        %1161 = vmatpush1.msra.mxu0 %v385
        %1162 = vmatprep.subr.mxu0 0.0
        %1163 = vmatpush1.msra.mxu0 %v384
        %1164 = vmatprep.subr.mxu0 0.0
        %1165 = vmatpush1.msra.mxu0 %v383
        %1166 = vmatprep.subr.mxu0 0.0
        %1167 = vmatpush1.msra.mxu0 %v382
        %1168 = vmatprep.subr.mxu0 0.0
        %1169 = vmatpush1.msra.mxu0 %v381
        %1170 = vmatprep.subr.mxu0 0.0
        %1171 = vmatpush1.msra.mxu0 %v380
        %1172 = vmatprep.subr.mxu0 0.0
        %1173 = vmatpush1.msra.mxu0 %v379
        %1174 = vmatprep.subr.mxu0 0.0
        %1175 = vmatpush1.msra.mxu0 %v378
        %1176 = vmatprep.subr.mxu0 0.0
        %1177 = vmatpush1.msra.mxu0 %v377
        %1178 = vmatprep.subr.mxu0 0.0
        %1179 = vmatpush1.msra.mxu0 %v376
        %1180 = vmatprep.subr.mxu0 0.0
        %1181 = vmatpush1.msra.mxu0 %v375
        %1182 = vmatprep.subr.mxu0 0.0
        %1183 = vmatpush1.msra.mxu0 %v374
        %1184 = vmatprep.subr.mxu0 0.0
        %1185 = vmatpush2.msra.mxu0 0.0
        %1186 = vmatprep.subr.mxu0 0.0
        %1187 = vmatpush2.msra.mxu0 0.0
        %1188 = vmatprep.subr.mxu0 0.0
        %1189 = vmatpush2.msra.mxu0 0.0
        %1190 = vmatprep.subr.mxu0 0.0
        %1191 = vmatpush2.msra.mxu0 0.0
        %1192 = vmatprep.subr.mxu0 0.0
        %1193 = vmatpush2.msra.mxu0 0.0
        %1194 = vmatprep.subr.mxu0 0.0
        %1195 = vmatpush2.msra.mxu0 0.0
        %1196 = vmatprep.subr.mxu0 0.0
        %1197 = vmatpush2.msra.mxu0 0.0
        %1198 = vmatprep.subr.mxu0 0.0
        %1199 = vmatpush2.msra.mxu0 0.0
        %1200 = vmatprep.subr.mxu0 0.0
        %1201 = vmatpush2.msra.mxu0 0.0
        %1202 = vmatprep.subr.mxu0 0.0
        %1203 = vmatpush2.msra.mxu0 0.0
        %1204 = vmatprep.subr.mxu0 0.0
        %1205 = vmatpush2.msra.mxu0 0.0
        %1206 = vmatprep.subr.mxu0 0.0
        %1207 = vmatpush2.msra.mxu0 0.0
        %1208 = vmatprep.subr.mxu0 0.0
        %1209 = vmatpush2.msra.mxu0 0.0
        %1210 = vmatprep.subr.mxu0 0.0
        %1211 = vmatpush2.msra.mxu0 0.0
        %1212 = vmatprep.subr.mxu0 0.0
        %1213 = vmatpush2.msra.mxu0 0.0
        %1214 = vmatprep.subr.mxu0 0.0
        %1215 = vmatpush2.msra.mxu0 0.0
        %1216 = vmatprep.mubr.f32.mxu0 0.0
        %1217 = vmatmul.mubr.f32.gmra.mxu0 %v1140
        %v1218 = vpop.f32.mrf.mxu0
        %v1219 = vadd.f32 %v1151, %v1218
        %v1220 = vpop.f32.mrf.mxu0
        %1221 = vmatprep.mubr.f32.mxu0 0.0
        %1222 = vmatmul.mubr.f32.gmra.mxu0 %v1141
        %v1223 = vpop.f32.mrf.mxu0
        %v1224 = vadd.f32 %v1151, %v1223
        %v1225 = vpop.f32.mrf.mxu0
        %1226 = vmatprep.mubr.f32.mxu0 0.0
        %1227 = vmatmul.mubr.f32.gmra.mxu0 %v1142
        %v1228 = vpop.f32.mrf.mxu0
        %v1229 = vadd.f32 %v1151, %v1228
        %v1230 = vpop.f32.mrf.mxu0
        %1231 = vmatprep.mubr.f32.mxu0 0.0
        %1232 = vmatmul.mubr.f32.gmra.mxu0 %v1143
        %v1233 = vpop.f32.mrf.mxu0
        %v1234 = vadd.f32 %v1151, %v1233
        %v1235 = vpop.f32.mrf.mxu0
        %1236 = vmatprep.mubr.f32.mxu0 0.0
        %1237 = vmatmul.mubr.f32.gmra.mxu0 %v1144
        %v1238 = vpop.f32.mrf.mxu0
        %v1239 = vadd.f32 %v1151, %v1238
        %v1240 = vpop.f32.mrf.mxu0
        %1241 = vmatprep.mubr.f32.mxu0 0.0
        %1242 = vmatmul.mubr.f32.gmra.mxu0 %v1145
        %v1243 = vpop.f32.mrf.mxu0
        %v1244 = vadd.f32 %v1151, %v1243
        %v1245 = vpop.f32.mrf.mxu0
        %1246 = vmatprep.mubr.f32.mxu0 0.0
        %1247 = vmatmul.mubr.f32.gmra.mxu0 %v1146
        %v1248 = vpop.f32.mrf.mxu0
        %v1249 = vadd.f32 %v1151, %v1248
        %v1250 = vpop.f32.mrf.mxu0
        %1251 = vmatprep.mubr.f32.mxu0 0.0
        %1252 = vmatmul.mubr.f32.gmra.mxu0 %v1147
        %v1253 = vpop.f32.mrf.mxu0
        %v1254 = vadd.f32 %v1151, %v1253
        %v1255 = vpop.f32.mrf.mxu0
        %1256 = vdwg.mxu0
        %v1257 = vmax.f32 %v1219, 0.0
        %v1258 = vmax.f32 %v1224, 0.0
        %v1259 = vmax.f32 %v1229, 0.0
        %v1260 = vmax.f32 %v1234, 0.0
        %v1261 = vmax.f32 %v1239, 0.0
        %v1262 = vmax.f32 %v1244, 0.0
        %v1263 = vmax.f32 %v1249, 0.0
        %v1264 = vmax.f32 %v1254, 0.0
        %v1265 = vld [vmem:[%s275] sm:$0xff]
        %v1266 = vld [vmem:[%s275 + $0x8] sm:$0xff]
        %v1267 = vld [vmem:[%s275 + $0x10] sm:$0xff]
        %v1268 = vld [vmem:[%s275 + $0x18] sm:$0xff]
        %v1269 = vld [vmem:[%s275 + $0x20] sm:$0xff]
        %v1270 = vld [vmem:[%s275 + $0x28] sm:$0xff]
        %v1271 = vld [vmem:[%s275 + $0x30] sm:$0xff]
        %v1272 = vld [vmem:[%s275 + $0x38] sm:$0xff]
        %1273 = vmatprep.subr.mxu0 0.0
        %1274 = vmatpush1.msra.mxu0 %v423
        %1275 = vmatprep.subr.mxu0 0.0
        %1276 = vmatpush1.msra.mxu0 %v422
        %1277 = vmatprep.subr.mxu0 0.0
        %1278 = vmatpush1.msra.mxu0 %v421
        %1279 = vmatprep.subr.mxu0 0.0
        %1280 = vmatpush1.msra.mxu0 %v420
        %1281 = vmatprep.subr.mxu0 0.0
        %1282 = vmatpush1.msra.mxu0 %v419
        %1283 = vmatprep.subr.mxu0 0.0
        %1284 = vmatpush1.msra.mxu0 %v418
        %1285 = vmatprep.subr.mxu0 0.0
        %1286 = vmatpush1.msra.mxu0 %v417
        %1287 = vmatprep.subr.mxu0 0.0
        %1288 = vmatpush1.msra.mxu0 %v416
        %1289 = vmatprep.subr.mxu0 0.0
        %1290 = vmatpush1.msra.mxu0 %v415
        %1291 = vmatprep.subr.mxu0 0.0
        %1292 = vmatpush1.msra.mxu0 %v414
        %1293 = vmatprep.subr.mxu0 0.0
        %1294 = vmatpush1.msra.mxu0 %v413
        %1295 = vmatprep.subr.mxu0 0.0
        %1296 = vmatpush1.msra.mxu0 %v412
        %1297 = vmatprep.subr.mxu0 0.0
        %1298 = vmatpush1.msra.mxu0 %v411
        %1299 = vmatprep.subr.mxu0 0.0
        %1300 = vmatpush1.msra.mxu0 %v410
        %1301 = vmatprep.subr.mxu0 0.0
        %1302 = vmatpush1.msra.mxu0 %v409
        %1303 = vmatprep.subr.mxu0 0.0
        %1304 = vmatpush1.msra.mxu0 %v408
        %1305 = vmatprep.subr.mxu0 0.0
        %1306 = vmatpush2.msra.mxu0 0.0
        %1307 = vmatprep.subr.mxu0 0.0
        %1308 = vmatpush2.msra.mxu0 0.0
        %1309 = vmatprep.subr.mxu0 0.0
        %1310 = vmatpush2.msra.mxu0 0.0
        %1311 = vmatprep.subr.mxu0 0.0
        %1312 = vmatpush2.msra.mxu0 0.0
        %1313 = vmatprep.subr.mxu0 0.0
        %1314 = vmatpush2.msra.mxu0 0.0
        %1315 = vmatprep.subr.mxu0 0.0
        %1316 = vmatpush2.msra.mxu0 0.0
        %1317 = vmatprep.subr.mxu0 0.0
        %1318 = vmatpush2.msra.mxu0 0.0
        %1319 = vmatprep.subr.mxu0 0.0
        %1320 = vmatpush2.msra.mxu0 0.0
        %1321 = vmatprep.subr.mxu0 0.0
        %1322 = vmatpush2.msra.mxu0 0.0
        %1323 = vmatprep.subr.mxu0 0.0
        %1324 = vmatpush2.msra.mxu0 0.0
        %1325 = vmatprep.subr.mxu0 0.0
        %1326 = vmatpush2.msra.mxu0 0.0
        %1327 = vmatprep.subr.mxu0 0.0
        %1328 = vmatpush2.msra.mxu0 0.0
        %1329 = vmatprep.subr.mxu0 0.0
        %1330 = vmatpush2.msra.mxu0 0.0
        %1331 = vmatprep.subr.mxu0 0.0
        %1332 = vmatpush2.msra.mxu0 0.0
        %1333 = vmatprep.subr.mxu0 0.0
        %1334 = vmatpush2.msra.mxu0 0.0
        %1335 = vmatprep.subr.mxu0 0.0
        %1336 = vmatpush2.msra.mxu0 0.0
        %1337 = vmatprep.mubr.f32.mxu0 0.0
        %1338 = vmatmul.mubr.f32.gmra.mxu0 %v1265
        %v1339 = vpop.f32.mrf.mxu0
        %v1340 = vadd.f32 0.0, %v1339
        %v1341 = vpop.f32.mrf.mxu0
        %1342 = vmatprep.mubr.f32.mxu0 0.0
        %1343 = vmatmul.mubr.f32.gmra.mxu0 %v1266
        %v1344 = vpop.f32.mrf.mxu0
        %v1345 = vadd.f32 0.0, %v1344
        %v1346 = vpop.f32.mrf.mxu0
        %1347 = vmatprep.mubr.f32.mxu0 0.0
        %1348 = vmatmul.mubr.f32.gmra.mxu0 %v1267
        %v1349 = vpop.f32.mrf.mxu0
        %v1350 = vadd.f32 0.0, %v1349
        %v1351 = vpop.f32.mrf.mxu0
        %1352 = vmatprep.mubr.f32.mxu0 0.0
        %1353 = vmatmul.mubr.f32.gmra.mxu0 %v1268
        %v1354 = vpop.f32.mrf.mxu0
        %v1355 = vadd.f32 0.0, %v1354
        %v1356 = vpop.f32.mrf.mxu0
        %1357 = vmatprep.mubr.f32.mxu0 0.0
        %1358 = vmatmul.mubr.f32.gmra.mxu0 %v1269
        %v1359 = vpop.f32.mrf.mxu0
        %v1360 = vadd.f32 0.0, %v1359
        %v1361 = vpop.f32.mrf.mxu0
        %1362 = vmatprep.mubr.f32.mxu0 0.0
        %1363 = vmatmul.mubr.f32.gmra.mxu0 %v1270
        %v1364 = vpop.f32.mrf.mxu0
        %v1365 = vadd.f32 0.0, %v1364
        %v1366 = vpop.f32.mrf.mxu0
        %1367 = vmatprep.mubr.f32.mxu0 0.0
        %1368 = vmatmul.mubr.f32.gmra.mxu0 %v1271
        %v1369 = vpop.f32.mrf.mxu0
        %v1370 = vadd.f32 0.0, %v1369
        %v1371 = vpop.f32.mrf.mxu0
        %1372 = vmatprep.mubr.f32.mxu0 0.0
        %1373 = vmatmul.mubr.f32.gmra.mxu0 %v1272
        %v1374 = vpop.f32.mrf.mxu0
        %v1375 = vadd.f32 0.0, %v1374
        %v1376 = vpop.f32.mrf.mxu0
        %1377 = vdwg.mxu0
        %1378 = vmatprep.subr.mxu0 0.0
        %1379 = vmatpush1.msra.mxu0 %v406
        %1380 = vmatprep.subr.mxu0 0.0
        %1381 = vmatpush1.msra.mxu0 %v405
        %1382 = vmatprep.subr.mxu0 0.0
        %1383 = vmatpush1.msra.mxu0 %v404
        %1384 = vmatprep.subr.mxu0 0.0
        %1385 = vmatpush1.msra.mxu0 %v403
        %1386 = vmatprep.subr.mxu0 0.0
        %1387 = vmatpush1.msra.mxu0 %v402
        %1388 = vmatprep.subr.mxu0 0.0
        %1389 = vmatpush1.msra.mxu0 %v401
        %1390 = vmatprep.subr.mxu0 0.0
        %1391 = vmatpush1.msra.mxu0 %v400
        %1392 = vmatprep.subr.mxu0 0.0
        %1393 = vmatpush1.msra.mxu0 %v399
        %1394 = vmatprep.subr.mxu0 0.0
        %1395 = vmatpush1.msra.mxu0 %v398
        %1396 = vmatprep.subr.mxu0 0.0
        %1397 = vmatpush1.msra.mxu0 %v397
        %1398 = vmatprep.subr.mxu0 0.0
        %1399 = vmatpush1.msra.mxu0 %v396
        %1400 = vmatprep.subr.mxu0 0.0
        %1401 = vmatpush1.msra.mxu0 %v395
        %1402 = vmatprep.subr.mxu0 0.0
        %1403 = vmatpush1.msra.mxu0 %v394
        %1404 = vmatprep.subr.mxu0 0.0
        %1405 = vmatpush1.msra.mxu0 %v393
        %1406 = vmatprep.subr.mxu0 0.0
        %1407 = vmatpush1.msra.mxu0 %v392
        %1408 = vmatprep.subr.mxu0 0.0
        %1409 = vmatpush1.msra.mxu0 %v391
        %1410 = vmatprep.subr.mxu0 0.0
        %1411 = vmatpush2.msra.mxu0 0.0
        %1412 = vmatprep.subr.mxu0 0.0
        %1413 = vmatpush2.msra.mxu0 0.0
        %1414 = vmatprep.subr.mxu0 0.0
        %1415 = vmatpush2.msra.mxu0 0.0
        %1416 = vmatprep.subr.mxu0 0.0
        %1417 = vmatpush2.msra.mxu0 0.0
        %1418 = vmatprep.subr.mxu0 0.0
        %1419 = vmatpush2.msra.mxu0 0.0
        %1420 = vmatprep.subr.mxu0 0.0
        %1421 = vmatpush2.msra.mxu0 0.0
        %1422 = vmatprep.subr.mxu0 0.0
        %1423 = vmatpush2.msra.mxu0 0.0
        %1424 = vmatprep.subr.mxu0 0.0
        %1425 = vmatpush2.msra.mxu0 0.0
        %1426 = vmatprep.subr.mxu0 0.0
        %1427 = vmatpush2.msra.mxu0 0.0
        %1428 = vmatprep.subr.mxu0 0.0
        %1429 = vmatpush2.msra.mxu0 0.0
        %1430 = vmatprep.subr.mxu0 0.0
        %1431 = vmatpush2.msra.mxu0 0.0
        %1432 = vmatprep.subr.mxu0 0.0
        %1433 = vmatpush2.msra.mxu0 0.0
        %1434 = vmatprep.subr.mxu0 0.0
        %1435 = vmatpush2.msra.mxu0 0.0
        %1436 = vmatprep.subr.mxu0 0.0
        %1437 = vmatpush2.msra.mxu0 0.0
        %1438 = vmatprep.subr.mxu0 0.0
        %1439 = vmatpush2.msra.mxu0 0.0
        %1440 = vmatprep.subr.mxu0 0.0
        %1441 = vmatpush2.msra.mxu0 0.0
        %1442 = vmatprep.mubr.f32.mxu0 0.0
        %1443 = vmatmul.mubr.f32.gmra.mxu0 %v1257
        %v1444 = vpop.f32.mrf.mxu0
        %v1445 = vadd.f32 %v1340, %v1444
        %v1446 = vpop.f32.mrf.mxu0
        %1447 = vmatprep.mubr.f32.mxu0 0.0
        %1448 = vmatmul.mubr.f32.gmra.mxu0 %v1258
        %v1449 = vpop.f32.mrf.mxu0
        %v1450 = vadd.f32 %v1345, %v1449
        %v1451 = vpop.f32.mrf.mxu0
        %1452 = vmatprep.mubr.f32.mxu0 0.0
        %1453 = vmatmul.mubr.f32.gmra.mxu0 %v1259
        %v1454 = vpop.f32.mrf.mxu0
        %v1455 = vadd.f32 %v1350, %v1454
        %v1456 = vpop.f32.mrf.mxu0
        %1457 = vmatprep.mubr.f32.mxu0 0.0
        %1458 = vmatmul.mubr.f32.gmra.mxu0 %v1260
        %v1459 = vpop.f32.mrf.mxu0
        %v1460 = vadd.f32 %v1355, %v1459
        %v1461 = vpop.f32.mrf.mxu0
        %1462 = vmatprep.mubr.f32.mxu0 0.0
        %1463 = vmatmul.mubr.f32.gmra.mxu0 %v1261
        %v1464 = vpop.f32.mrf.mxu0
        %v1465 = vadd.f32 %v1360, %v1464
        %v1466 = vpop.f32.mrf.mxu0
        %1467 = vmatprep.mubr.f32.mxu0 0.0
        %1468 = vmatmul.mubr.f32.gmra.mxu0 %v1262
        %v1469 = vpop.f32.mrf.mxu0
        %v1470 = vadd.f32 %v1365, %v1469
        %v1471 = vpop.f32.mrf.mxu0
        %1472 = vmatprep.mubr.f32.mxu0 0.0
        %1473 = vmatmul.mubr.f32.gmra.mxu0 %v1263
        %v1474 = vpop.f32.mrf.mxu0
        %v1475 = vadd.f32 %v1370, %v1474
        %v1476 = vpop.f32.mrf.mxu0
        %1477 = vmatprep.mubr.f32.mxu0 0.0
        %1478 = vmatmul.mubr.f32.gmra.mxu0 %v1264
        %v1479 = vpop.f32.mrf.mxu0
        %v1480 = vadd.f32 %v1375, %v1479
        %v1481 = vpop.f32.mrf.mxu0
        %1482 = vdwg.mxu0
        %v1483 = vlaneseq
        %v1484 = vshrl.u32 %v1483, 7
        %v1485 = vsub.s32 0, %v1484
        %v1486 = vrot.slane %v336, %v1485
        %v1487 = vadd.f32 %v1445, %v1486
        %v1488 = vadd.f32 %v1450, %v1486
        %v1489 = vadd.f32 %v1455, %v1486
        %v1490 = vadd.f32 %v1460, %v1486
        %v1491 = vadd.f32 %v1465, %v1486
        %v1492 = vadd.f32 %v1470, %v1486
        %v1493 = vadd.f32 %v1475, %v1486
        %v1494 = vadd.f32 %v1480, %v1486
        %v1495 = vmax.f32 %v1487, 0.0
        %v1496 = vmax.f32 %v1488, 0.0
        %v1497 = vmax.f32 %v1489, 0.0
        %v1498 = vmax.f32 %v1490, 0.0
        %v1499 = vmax.f32 %v1491, 0.0
        %v1500 = vmax.f32 %v1492, 0.0
        %v1501 = vmax.f32 %v1493, 0.0
        %v1502 = vmax.f32 %v1494, 0.0
        %v1503 = vlaneseq
        %v1504 = vshrl.u32 %v1503, 7
        %v1505 = vsub.s32 0, %v1504
        %v1506 = vrot.slane %v337, %v1505
        %1507 = vmatprep.subr.mxu0 0.0
        %1508 = vmatpush1.msra.mxu0 %v440
        %1509 = vmatprep.subr.mxu0 0.0
        %1510 = vmatpush1.msra.mxu0 %v439
        %1511 = vmatprep.subr.mxu0 0.0
        %1512 = vmatpush1.msra.mxu0 %v438
        %1513 = vmatprep.subr.mxu0 0.0
        %1514 = vmatpush1.msra.mxu0 %v437
        %1515 = vmatprep.subr.mxu0 0.0
        %1516 = vmatpush1.msra.mxu0 %v436
        %1517 = vmatprep.subr.mxu0 0.0
        %1518 = vmatpush1.msra.mxu0 %v435
        %1519 = vmatprep.subr.mxu0 0.0
        %1520 = vmatpush1.msra.mxu0 %v434
        %1521 = vmatprep.subr.mxu0 0.0
        %1522 = vmatpush1.msra.mxu0 %v433
        %1523 = vmatprep.subr.mxu0 0.0
        %1524 = vmatpush1.msra.mxu0 %v432
        %1525 = vmatprep.subr.mxu0 0.0
        %1526 = vmatpush1.msra.mxu0 %v431
        %1527 = vmatprep.subr.mxu0 0.0
        %1528 = vmatpush1.msra.mxu0 %v430
        %1529 = vmatprep.subr.mxu0 0.0
        %1530 = vmatpush1.msra.mxu0 %v429
        %1531 = vmatprep.subr.mxu0 0.0
        %1532 = vmatpush1.msra.mxu0 %v428
        %1533 = vmatprep.subr.mxu0 0.0
        %1534 = vmatpush1.msra.mxu0 %v427
        %1535 = vmatprep.subr.mxu0 0.0
        %1536 = vmatpush1.msra.mxu0 %v426
        %1537 = vmatprep.subr.mxu0 0.0
        %1538 = vmatpush1.msra.mxu0 %v425
        %1539 = vmatprep.subr.mxu0 0.0
        %1540 = vmatpush2.msra.mxu0 0.0
        %1541 = vmatprep.subr.mxu0 0.0
        %1542 = vmatpush2.msra.mxu0 0.0
        %1543 = vmatprep.subr.mxu0 0.0
        %1544 = vmatpush2.msra.mxu0 0.0
        %1545 = vmatprep.subr.mxu0 0.0
        %1546 = vmatpush2.msra.mxu0 0.0
        %1547 = vmatprep.subr.mxu0 0.0
        %1548 = vmatpush2.msra.mxu0 0.0
        %1549 = vmatprep.subr.mxu0 0.0
        %1550 = vmatpush2.msra.mxu0 0.0
        %1551 = vmatprep.subr.mxu0 0.0
        %1552 = vmatpush2.msra.mxu0 0.0
        %1553 = vmatprep.subr.mxu0 0.0
        %1554 = vmatpush2.msra.mxu0 0.0
        %1555 = vmatprep.subr.mxu0 0.0
        %1556 = vmatpush2.msra.mxu0 0.0
        %1557 = vmatprep.subr.mxu0 0.0
        %1558 = vmatpush2.msra.mxu0 0.0
        %1559 = vmatprep.subr.mxu0 0.0
        %1560 = vmatpush2.msra.mxu0 0.0
        %1561 = vmatprep.subr.mxu0 0.0
        %1562 = vmatpush2.msra.mxu0 0.0
        %1563 = vmatprep.subr.mxu0 0.0
        %1564 = vmatpush2.msra.mxu0 0.0
        %1565 = vmatprep.subr.mxu0 0.0
        %1566 = vmatpush2.msra.mxu0 0.0
        %1567 = vmatprep.subr.mxu0 0.0
        %1568 = vmatpush2.msra.mxu0 0.0
        %1569 = vmatprep.subr.mxu0 0.0
        %1570 = vmatpush2.msra.mxu0 0.0
        %1571 = vmatprep.mubr.f32.mxu0 0.0
        %1572 = vmatmul.mubr.f32.gmra.mxu0 %v1495
        %v1573 = vpop.f32.mrf.mxu0
        %v1574 = vadd.f32 %v1506, %v1573
        %v1575 = vpop.f32.mrf.mxu0
        %1576 = vmatprep.mubr.f32.mxu0 0.0
        %1577 = vmatmul.mubr.f32.gmra.mxu0 %v1496
        %v1578 = vpop.f32.mrf.mxu0
        %v1579 = vadd.f32 %v1506, %v1578
        %v1580 = vpop.f32.mrf.mxu0
        %1581 = vmatprep.mubr.f32.mxu0 0.0
        %1582 = vmatmul.mubr.f32.gmra.mxu0 %v1497
        %v1583 = vpop.f32.mrf.mxu0
        %v1584 = vadd.f32 %v1506, %v1583
        %v1585 = vpop.f32.mrf.mxu0
        %1586 = vmatprep.mubr.f32.mxu0 0.0
        %1587 = vmatmul.mubr.f32.gmra.mxu0 %v1498
        %v1588 = vpop.f32.mrf.mxu0
        %v1589 = vadd.f32 %v1506, %v1588
        %v1590 = vpop.f32.mrf.mxu0
        %1591 = vmatprep.mubr.f32.mxu0 0.0
        %1592 = vmatmul.mubr.f32.gmra.mxu0 %v1499
        %v1593 = vpop.f32.mrf.mxu0
        %v1594 = vadd.f32 %v1506, %v1593
        %v1595 = vpop.f32.mrf.mxu0
        %1596 = vmatprep.mubr.f32.mxu0 0.0
        %1597 = vmatmul.mubr.f32.gmra.mxu0 %v1500
        %v1598 = vpop.f32.mrf.mxu0
        %v1599 = vadd.f32 %v1506, %v1598
        %v1600 = vpop.f32.mrf.mxu0
        %1601 = vmatprep.mubr.f32.mxu0 0.0
        %1602 = vmatmul.mubr.f32.gmra.mxu0 %v1501
        %v1603 = vpop.f32.mrf.mxu0
        %v1604 = vadd.f32 %v1506, %v1603
        %v1605 = vpop.f32.mrf.mxu0
        %1606 = vmatprep.mubr.f32.mxu0 0.0
        %1607 = vmatmul.mubr.f32.gmra.mxu0 %v1502
        %v1608 = vpop.f32.mrf.mxu0
        %v1609 = vadd.f32 %v1506, %v1608
        %v1610 = vpop.f32.mrf.mxu0
        %1611 = vdwg.mxu0
        %1612 = vadd.xlane.f32.xlu0 %v1257
        %v1613 = vpop.xlane.xlu0 %1612
        %1614 = vadd.xlane.f32.xlu0 %v1258
        %v1615 = vpop.xlane.xlu0 %1614
        %1616 = vadd.xlane.f32.xlu0 %v1259
        %v1617 = vpop.xlane.xlu0 %1616
        %1618 = vadd.xlane.f32.xlu0 %v1260
        %v1619 = vpop.xlane.xlu0 %1618
        %1620 = vadd.xlane.f32.xlu0 %v1261
        %v1621 = vpop.xlane.xlu0 %1620
        %1622 = vadd.xlane.f32.xlu0 %v1262
        %v1623 = vpop.xlane.xlu0 %1622
        %1624 = vadd.xlane.f32.xlu0 %v1263
        %v1625 = vpop.xlane.xlu0 %1624
        %1626 = vadd.xlane.f32.xlu0 %v1264
        %v1627 = vpop.xlane.xlu0 %1626
        %v1628 = vmul.f32 %v1613, %v910
        %v1629 = vmul.f32 %v1615, %v910
        %v1630 = vmul.f32 %v1617, %v910
        %v1631 = vmul.f32 %v1619, %v910
        %v1632 = vmul.f32 %v1621, %v910
        %v1633 = vmul.f32 %v1623, %v910
        %v1634 = vmul.f32 %v1625, %v910
        %v1635 = vmul.f32 %v1627, %v910
        %v1636 = vmul.f32 %v1257, %v1257
        %v1637 = vmul.f32 %v1258, %v1258
        %v1638 = vmul.f32 %v1259, %v1259
        %v1639 = vmul.f32 %v1260, %v1260
        %v1640 = vmul.f32 %v1261, %v1261
        %v1641 = vmul.f32 %v1262, %v1262
        %v1642 = vmul.f32 %v1263, %v1263
        %v1643 = vmul.f32 %v1264, %v1264
        %1644 = vadd.xlane.f32.xlu0 %v1636
        %v1645 = vpop.xlane.xlu0 %1644
        %1646 = vadd.xlane.f32.xlu0 %v1637
        %v1647 = vpop.xlane.xlu0 %1646
        %1648 = vadd.xlane.f32.xlu0 %v1638
        %v1649 = vpop.xlane.xlu0 %1648
        %1650 = vadd.xlane.f32.xlu0 %v1639
        %v1651 = vpop.xlane.xlu0 %1650
        %1652 = vadd.xlane.f32.xlu0 %v1640
        %v1653 = vpop.xlane.xlu0 %1652
        %1654 = vadd.xlane.f32.xlu0 %v1641
        %v1655 = vpop.xlane.xlu0 %1654
        %1656 = vadd.xlane.f32.xlu0 %v1642
        %v1657 = vpop.xlane.xlu0 %1656
        %1658 = vadd.xlane.f32.xlu0 %v1643
        %v1659 = vpop.xlane.xlu0 %1658
        %v1660 = vmul.f32 %v1645, %v910
        %v1661 = vmul.f32 %v1647, %v910
        %v1662 = vmul.f32 %v1649, %v910
        %v1663 = vmul.f32 %v1651, %v910
        %v1664 = vmul.f32 %v1653, %v910
        %v1665 = vmul.f32 %v1655, %v910
        %v1666 = vmul.f32 %v1657, %v910
        %v1667 = vmul.f32 %v1659, %v910
        %v1668 = vmul.f32 %v1628, %v1628
        %v1669 = vmul.f32 %v1629, %v1629
        %v1670 = vmul.f32 %v1630, %v1630
        %v1671 = vmul.f32 %v1631, %v1631
        %v1672 = vmul.f32 %v1632, %v1632
        %v1673 = vmul.f32 %v1633, %v1633
        %v1674 = vmul.f32 %v1634, %v1634
        %v1675 = vmul.f32 %v1635, %v1635
        %v1676 = vsub.f32 %v1660, %v1668
        %v1677 = vsub.f32 %v1661, %v1669
        %v1678 = vsub.f32 %v1662, %v1670
        %v1679 = vsub.f32 %v1663, %v1671
        %v1680 = vsub.f32 %v1664, %v1672
        %v1681 = vsub.f32 %v1665, %v1673
        %v1682 = vsub.f32 %v1666, %v1674
        %v1683 = vsub.f32 %v1667, %v1675
        %v1684 = vadd.f32 %v1676, 1e-05
        %v1685 = vadd.f32 %v1677, 1e-05
        %v1686 = vadd.f32 %v1678, 1e-05
        %v1687 = vadd.f32 %v1679, 1e-05
        %v1688 = vadd.f32 %v1680, 1e-05
        %v1689 = vadd.f32 %v1681, 1e-05
        %v1690 = vadd.f32 %v1682, 1e-05
        %v1691 = vadd.f32 %v1683, 1e-05
        %v1692 = vrsqrt.pop %v1684
        %v1693 = vrsqrt.pop %v1685
        %v1694 = vrsqrt.pop %v1686
        %v1695 = vrsqrt.pop %v1687
        %v1696 = vrsqrt.pop %v1688
        %v1697 = vrsqrt.pop %v1689
        %v1698 = vrsqrt.pop %v1690
        %v1699 = vrsqrt.pop %v1691
        %v1700 = vsub.f32 %v1257, %v1628
        %v1701 = vsub.f32 %v1258, %v1629
        %v1702 = vsub.f32 %v1259, %v1630
        %v1703 = vsub.f32 %v1260, %v1631
        %v1704 = vsub.f32 %v1261, %v1632
        %v1705 = vsub.f32 %v1262, %v1633
        %v1706 = vsub.f32 %v1263, %v1634
        %v1707 = vsub.f32 %v1264, %v1635
        %v1708 = vmul.f32 %v1700, %v1692
        %v1709 = vmul.f32 %v1701, %v1693
        %v1710 = vmul.f32 %v1702, %v1694
        %v1711 = vmul.f32 %v1703, %v1695
        %v1712 = vmul.f32 %v1704, %v1696
        %v1713 = vmul.f32 %v1705, %v1697
        %v1714 = vmul.f32 %v1706, %v1698
        %v1715 = vmul.f32 %v1707, %v1699
        %v1716 = vlaneseq
        %v1717 = vshrl.u32 %v1716, 7
        %v1718 = vsub.s32 0, %v1717
        %v1719 = vrot.slane %v338, %v1718
        %v1720 = vmul.f32 %v1708, %v1719
        %v1721 = vmul.f32 %v1709, %v1719
        %v1722 = vmul.f32 %v1710, %v1719
        %v1723 = vmul.f32 %v1711, %v1719
        %v1724 = vmul.f32 %v1712, %v1719
        %v1725 = vmul.f32 %v1713, %v1719
        %v1726 = vmul.f32 %v1714, %v1719
        %v1727 = vmul.f32 %v1715, %v1719
        %v1728 = vlaneseq
        %v1729 = vshrl.u32 %v1728, 7
        %v1730 = vsub.s32 0, %v1729
        %v1731 = vrot.slane %v339, %v1730
        %v1732 = vadd.f32 %v1720, %v1731
        %v1733 = vadd.f32 %v1721, %v1731
        %v1734 = vadd.f32 %v1722, %v1731
        %v1735 = vadd.f32 %v1723, %v1731
        %v1736 = vadd.f32 %v1724, %v1731
        %v1737 = vadd.f32 %v1725, %v1731
        %v1738 = vadd.f32 %v1726, %v1731
        %v1739 = vadd.f32 %v1727, %v1731
        %v1740 = vmax.f32 %v1732, 0.0
        %v1741 = vmax.f32 %v1733, 0.0
        %v1742 = vmax.f32 %v1734, 0.0
        %v1743 = vmax.f32 %v1735, 0.0
        %v1744 = vmax.f32 %v1736, 0.0
        %v1745 = vmax.f32 %v1737, 0.0
        %v1746 = vmax.f32 %v1738, 0.0
        %v1747 = vmax.f32 %v1739, 0.0
        %1748 = vmatprep.subr.mxu0 0.0
        %1749 = vmatpush1.msra.mxu0 %v423
        %1750 = vmatprep.subr.mxu0 0.0
        %1751 = vmatpush1.msra.mxu0 %v422
        %1752 = vmatprep.subr.mxu0 0.0
        %1753 = vmatpush1.msra.mxu0 %v421
        %1754 = vmatprep.subr.mxu0 0.0
        %1755 = vmatpush1.msra.mxu0 %v420
        %1756 = vmatprep.subr.mxu0 0.0
        %1757 = vmatpush1.msra.mxu0 %v419
        %1758 = vmatprep.subr.mxu0 0.0
        %1759 = vmatpush1.msra.mxu0 %v418
        %1760 = vmatprep.subr.mxu0 0.0
        %1761 = vmatpush1.msra.mxu0 %v417
        %1762 = vmatprep.subr.mxu0 0.0
        %1763 = vmatpush1.msra.mxu0 %v416
        %1764 = vmatprep.subr.mxu0 0.0
        %1765 = vmatpush1.msra.mxu0 %v415
        %1766 = vmatprep.subr.mxu0 0.0
        %1767 = vmatpush1.msra.mxu0 %v414
        %1768 = vmatprep.subr.mxu0 0.0
        %1769 = vmatpush1.msra.mxu0 %v413
        %1770 = vmatprep.subr.mxu0 0.0
        %1771 = vmatpush1.msra.mxu0 %v412
        %1772 = vmatprep.subr.mxu0 0.0
        %1773 = vmatpush1.msra.mxu0 %v411
        %1774 = vmatprep.subr.mxu0 0.0
        %1775 = vmatpush1.msra.mxu0 %v410
        %1776 = vmatprep.subr.mxu0 0.0
        %1777 = vmatpush1.msra.mxu0 %v409
        %1778 = vmatprep.subr.mxu0 0.0
        %1779 = vmatpush1.msra.mxu0 %v408
        %1780 = vmatprep.subr.mxu0 0.0
        %1781 = vmatpush2.msra.mxu0 0.0
        %1782 = vmatprep.subr.mxu0 0.0
        %1783 = vmatpush2.msra.mxu0 0.0
        %1784 = vmatprep.subr.mxu0 0.0
        %1785 = vmatpush2.msra.mxu0 0.0
        %1786 = vmatprep.subr.mxu0 0.0
        %1787 = vmatpush2.msra.mxu0 0.0
        %1788 = vmatprep.subr.mxu0 0.0
        %1789 = vmatpush2.msra.mxu0 0.0
        %1790 = vmatprep.subr.mxu0 0.0
        %1791 = vmatpush2.msra.mxu0 0.0
        %1792 = vmatprep.subr.mxu0 0.0
        %1793 = vmatpush2.msra.mxu0 0.0
        %1794 = vmatprep.subr.mxu0 0.0
        %1795 = vmatpush2.msra.mxu0 0.0
        %1796 = vmatprep.subr.mxu0 0.0
        %1797 = vmatpush2.msra.mxu0 0.0
        %1798 = vmatprep.subr.mxu0 0.0
        %1799 = vmatpush2.msra.mxu0 0.0
        %1800 = vmatprep.subr.mxu0 0.0
        %1801 = vmatpush2.msra.mxu0 0.0
        %1802 = vmatprep.subr.mxu0 0.0
        %1803 = vmatpush2.msra.mxu0 0.0
        %1804 = vmatprep.subr.mxu0 0.0
        %1805 = vmatpush2.msra.mxu0 0.0
        %1806 = vmatprep.subr.mxu0 0.0
        %1807 = vmatpush2.msra.mxu0 0.0
        %1808 = vmatprep.subr.mxu0 0.0
        %1809 = vmatpush2.msra.mxu0 0.0
        %1810 = vmatprep.subr.mxu0 0.0
        %1811 = vmatpush2.msra.mxu0 0.0
        %1812 = vmatprep.mubr.f32.mxu0 0.0
        %1813 = vmatmul.mubr.f32.gmra.mxu0 %v1740
        %v1814 = vpop.f32.mrf.mxu0
        %v1815 = vadd.f32 0.0, %v1814
        %v1816 = vpop.f32.mrf.mxu0
        %1817 = vmatprep.mubr.f32.mxu0 0.0
        %1818 = vmatmul.mubr.f32.gmra.mxu0 %v1741
        %v1819 = vpop.f32.mrf.mxu0
        %v1820 = vadd.f32 0.0, %v1819
        %v1821 = vpop.f32.mrf.mxu0
        %1822 = vmatprep.mubr.f32.mxu0 0.0
        %1823 = vmatmul.mubr.f32.gmra.mxu0 %v1742
        %v1824 = vpop.f32.mrf.mxu0
        %v1825 = vadd.f32 0.0, %v1824
        %v1826 = vpop.f32.mrf.mxu0
        %1827 = vmatprep.mubr.f32.mxu0 0.0
        %1828 = vmatmul.mubr.f32.gmra.mxu0 %v1743
        %v1829 = vpop.f32.mrf.mxu0
        %v1830 = vadd.f32 0.0, %v1829
        %v1831 = vpop.f32.mrf.mxu0
        %1832 = vmatprep.mubr.f32.mxu0 0.0
        %1833 = vmatmul.mubr.f32.gmra.mxu0 %v1744
        %v1834 = vpop.f32.mrf.mxu0
        %v1835 = vadd.f32 0.0, %v1834
        %v1836 = vpop.f32.mrf.mxu0
        %1837 = vmatprep.mubr.f32.mxu0 0.0
        %1838 = vmatmul.mubr.f32.gmra.mxu0 %v1745
        %v1839 = vpop.f32.mrf.mxu0
        %v1840 = vadd.f32 0.0, %v1839
        %v1841 = vpop.f32.mrf.mxu0
        %1842 = vmatprep.mubr.f32.mxu0 0.0
        %1843 = vmatmul.mubr.f32.gmra.mxu0 %v1746
        %v1844 = vpop.f32.mrf.mxu0
        %v1845 = vadd.f32 0.0, %v1844
        %v1846 = vpop.f32.mrf.mxu0
        %1847 = vmatprep.mubr.f32.mxu0 0.0
        %1848 = vmatmul.mubr.f32.gmra.mxu0 %v1747
        %v1849 = vpop.f32.mrf.mxu0
        %v1850 = vadd.f32 0.0, %v1849
        %v1851 = vpop.f32.mrf.mxu0
        %1852 = vdwg.mxu0
        %1853 = vmatprep.subr.mxu0 0.0
        %1854 = vmatpush1.msra.mxu0 %v406
        %1855 = vmatprep.subr.mxu0 0.0
        %1856 = vmatpush1.msra.mxu0 %v405
        %1857 = vmatprep.subr.mxu0 0.0
        %1858 = vmatpush1.msra.mxu0 %v404
        %1859 = vmatprep.subr.mxu0 0.0
        %1860 = vmatpush1.msra.mxu0 %v403
        %1861 = vmatprep.subr.mxu0 0.0
        %1862 = vmatpush1.msra.mxu0 %v402
        %1863 = vmatprep.subr.mxu0 0.0
        %1864 = vmatpush1.msra.mxu0 %v401
        %1865 = vmatprep.subr.mxu0 0.0
        %1866 = vmatpush1.msra.mxu0 %v400
        %1867 = vmatprep.subr.mxu0 0.0
        %1868 = vmatpush1.msra.mxu0 %v399
        %1869 = vmatprep.subr.mxu0 0.0
        %1870 = vmatpush1.msra.mxu0 %v398
        %1871 = vmatprep.subr.mxu0 0.0
        %1872 = vmatpush1.msra.mxu0 %v397
        %1873 = vmatprep.subr.mxu0 0.0
        %1874 = vmatpush1.msra.mxu0 %v396
        %1875 = vmatprep.subr.mxu0 0.0
        %1876 = vmatpush1.msra.mxu0 %v395
        %1877 = vmatprep.subr.mxu0 0.0
        %1878 = vmatpush1.msra.mxu0 %v394
        %1879 = vmatprep.subr.mxu0 0.0
        %1880 = vmatpush1.msra.mxu0 %v393
        %1881 = vmatprep.subr.mxu0 0.0
        %1882 = vmatpush1.msra.mxu0 %v392
        %1883 = vmatprep.subr.mxu0 0.0
        %1884 = vmatpush1.msra.mxu0 %v391
        %1885 = vmatprep.subr.mxu0 0.0
        %1886 = vmatpush2.msra.mxu0 0.0
        %1887 = vmatprep.subr.mxu0 0.0
        %1888 = vmatpush2.msra.mxu0 0.0
        %1889 = vmatprep.subr.mxu0 0.0
        %1890 = vmatpush2.msra.mxu0 0.0
        %1891 = vmatprep.subr.mxu0 0.0
        %1892 = vmatpush2.msra.mxu0 0.0
        %1893 = vmatprep.subr.mxu0 0.0
        %1894 = vmatpush2.msra.mxu0 0.0
        %1895 = vmatprep.subr.mxu0 0.0
        %1896 = vmatpush2.msra.mxu0 0.0
        %1897 = vmatprep.subr.mxu0 0.0
        %1898 = vmatpush2.msra.mxu0 0.0
        %1899 = vmatprep.subr.mxu0 0.0
        %1900 = vmatpush2.msra.mxu0 0.0
        %1901 = vmatprep.subr.mxu0 0.0
        %1902 = vmatpush2.msra.mxu0 0.0
        %1903 = vmatprep.subr.mxu0 0.0
        %1904 = vmatpush2.msra.mxu0 0.0
        %1905 = vmatprep.subr.mxu0 0.0
        %1906 = vmatpush2.msra.mxu0 0.0
        %1907 = vmatprep.subr.mxu0 0.0
        %1908 = vmatpush2.msra.mxu0 0.0
        %1909 = vmatprep.subr.mxu0 0.0
        %1910 = vmatpush2.msra.mxu0 0.0
        %1911 = vmatprep.subr.mxu0 0.0
        %1912 = vmatpush2.msra.mxu0 0.0
        %1913 = vmatprep.subr.mxu0 0.0
        %1914 = vmatpush2.msra.mxu0 0.0
        %1915 = vmatprep.subr.mxu0 0.0
        %1916 = vmatpush2.msra.mxu0 0.0
        %1917 = vmatprep.mubr.f32.mxu0 0.0
        %1918 = vmatmul.mubr.f32.gmra.mxu0 %v1574
        %v1919 = vpop.f32.mrf.mxu0
        %v1920 = vadd.f32 %v1815, %v1919
        %v1921 = vpop.f32.mrf.mxu0
        %1922 = vmatprep.mubr.f32.mxu0 0.0
        %1923 = vmatmul.mubr.f32.gmra.mxu0 %v1579
        %v1924 = vpop.f32.mrf.mxu0
        %v1925 = vadd.f32 %v1820, %v1924
        %v1926 = vpop.f32.mrf.mxu0
        %1927 = vmatprep.mubr.f32.mxu0 0.0
        %1928 = vmatmul.mubr.f32.gmra.mxu0 %v1584
        %v1929 = vpop.f32.mrf.mxu0
        %v1930 = vadd.f32 %v1825, %v1929
        %v1931 = vpop.f32.mrf.mxu0
        %1932 = vmatprep.mubr.f32.mxu0 0.0
        %1933 = vmatmul.mubr.f32.gmra.mxu0 %v1589
        %v1934 = vpop.f32.mrf.mxu0
        %v1935 = vadd.f32 %v1830, %v1934
        %v1936 = vpop.f32.mrf.mxu0
        %1937 = vmatprep.mubr.f32.mxu0 0.0
        %1938 = vmatmul.mubr.f32.gmra.mxu0 %v1594
        %v1939 = vpop.f32.mrf.mxu0
        %v1940 = vadd.f32 %v1835, %v1939
        %v1941 = vpop.f32.mrf.mxu0
        %1942 = vmatprep.mubr.f32.mxu0 0.0
        %1943 = vmatmul.mubr.f32.gmra.mxu0 %v1599
        %v1944 = vpop.f32.mrf.mxu0
        %v1945 = vadd.f32 %v1840, %v1944
        %v1946 = vpop.f32.mrf.mxu0
        %1947 = vmatprep.mubr.f32.mxu0 0.0
        %1948 = vmatmul.mubr.f32.gmra.mxu0 %v1604
        %v1949 = vpop.f32.mrf.mxu0
        %v1950 = vadd.f32 %v1845, %v1949
        %v1951 = vpop.f32.mrf.mxu0
        %1952 = vmatprep.mubr.f32.mxu0 0.0
        %1953 = vmatmul.mubr.f32.gmra.mxu0 %v1609
        %v1954 = vpop.f32.mrf.mxu0
        %v1955 = vadd.f32 %v1850, %v1954
        %v1956 = vpop.f32.mrf.mxu0
        %1957 = vdwg.mxu0
        %v1958 = vadd.f32 %v1920, %v1486
        %v1959 = vadd.f32 %v1925, %v1486
        %v1960 = vadd.f32 %v1930, %v1486
        %v1961 = vadd.f32 %v1935, %v1486
        %v1962 = vadd.f32 %v1940, %v1486
        %v1963 = vadd.f32 %v1945, %v1486
        %v1964 = vadd.f32 %v1950, %v1486
        %v1965 = vadd.f32 %v1955, %v1486
        %v1966 = vmax.f32 %v1958, 0.0
        %v1967 = vmax.f32 %v1959, 0.0
        %v1968 = vmax.f32 %v1960, 0.0
        %v1969 = vmax.f32 %v1961, 0.0
        %v1970 = vmax.f32 %v1962, 0.0
        %v1971 = vmax.f32 %v1963, 0.0
        %v1972 = vmax.f32 %v1964, 0.0
        %v1973 = vmax.f32 %v1965, 0.0
        %1974 = vmatprep.subr.mxu0 0.0
        %1975 = vmatpush1.msra.mxu0 %v440
        %1976 = vmatprep.subr.mxu0 0.0
        %1977 = vmatpush1.msra.mxu0 %v439
        %1978 = vmatprep.subr.mxu0 0.0
        %1979 = vmatpush1.msra.mxu0 %v438
        %1980 = vmatprep.subr.mxu0 0.0
        %1981 = vmatpush1.msra.mxu0 %v437
        %1982 = vmatprep.subr.mxu0 0.0
        %1983 = vmatpush1.msra.mxu0 %v436
        %1984 = vmatprep.subr.mxu0 0.0
        %1985 = vmatpush1.msra.mxu0 %v435
        %1986 = vmatprep.subr.mxu0 0.0
        %1987 = vmatpush1.msra.mxu0 %v434
        %1988 = vmatprep.subr.mxu0 0.0
        %1989 = vmatpush1.msra.mxu0 %v433
        %1990 = vmatprep.subr.mxu0 0.0
        %1991 = vmatpush1.msra.mxu0 %v432
        %1992 = vmatprep.subr.mxu0 0.0
        %1993 = vmatpush1.msra.mxu0 %v431
        %1994 = vmatprep.subr.mxu0 0.0
        %1995 = vmatpush1.msra.mxu0 %v430
        %1996 = vmatprep.subr.mxu0 0.0
        %1997 = vmatpush1.msra.mxu0 %v429
        %1998 = vmatprep.subr.mxu0 0.0
        %1999 = vmatpush1.msra.mxu0 %v428
        %2000 = vmatprep.subr.mxu0 0.0
        %2001 = vmatpush1.msra.mxu0 %v427
        %2002 = vmatprep.subr.mxu0 0.0
        %2003 = vmatpush1.msra.mxu0 %v426
        %2004 = vmatprep.subr.mxu0 0.0
        %2005 = vmatpush1.msra.mxu0 %v425
        %2006 = vmatprep.subr.mxu0 0.0
        %2007 = vmatpush2.msra.mxu0 0.0
        %2008 = vmatprep.subr.mxu0 0.0
        %2009 = vmatpush2.msra.mxu0 0.0
        %2010 = vmatprep.subr.mxu0 0.0
        %2011 = vmatpush2.msra.mxu0 0.0
        %2012 = vmatprep.subr.mxu0 0.0
        %2013 = vmatpush2.msra.mxu0 0.0
        %2014 = vmatprep.subr.mxu0 0.0
        %2015 = vmatpush2.msra.mxu0 0.0
        %2016 = vmatprep.subr.mxu0 0.0
        %2017 = vmatpush2.msra.mxu0 0.0
        %2018 = vmatprep.subr.mxu0 0.0
        %2019 = vmatpush2.msra.mxu0 0.0
        %2020 = vmatprep.subr.mxu0 0.0
        %2021 = vmatpush2.msra.mxu0 0.0
        %2022 = vmatprep.subr.mxu0 0.0
        %2023 = vmatpush2.msra.mxu0 0.0
        %2024 = vmatprep.subr.mxu0 0.0
        %2025 = vmatpush2.msra.mxu0 0.0
        %2026 = vmatprep.subr.mxu0 0.0
        %2027 = vmatpush2.msra.mxu0 0.0
        %2028 = vmatprep.subr.mxu0 0.0
        %2029 = vmatpush2.msra.mxu0 0.0
        %2030 = vmatprep.subr.mxu0 0.0
        %2031 = vmatpush2.msra.mxu0 0.0
        %2032 = vmatprep.subr.mxu0 0.0
        %2033 = vmatpush2.msra.mxu0 0.0
        %2034 = vmatprep.subr.mxu0 0.0
        %2035 = vmatpush2.msra.mxu0 0.0
        %2036 = vmatprep.subr.mxu0 0.0
        %2037 = vmatpush2.msra.mxu0 0.0
        %2038 = vmatprep.mubr.f32.mxu0 0.0
        %2039 = vmatmul.mubr.f32.gmra.mxu0 %v1966
        %v2040 = vpop.f32.mrf.mxu0
        %v2041 = vadd.f32 %v1506, %v2040
        %v2042 = vpop.f32.mrf.mxu0
        %2043 = vmatprep.mubr.f32.mxu0 0.0
        %2044 = vmatmul.mubr.f32.gmra.mxu0 %v1967
        %v2045 = vpop.f32.mrf.mxu0
        %v2046 = vadd.f32 %v1506, %v2045
        %v2047 = vpop.f32.mrf.mxu0
        %2048 = vmatprep.mubr.f32.mxu0 0.0
        %2049 = vmatmul.mubr.f32.gmra.mxu0 %v1968
        %v2050 = vpop.f32.mrf.mxu0
        %v2051 = vadd.f32 %v1506, %v2050
        %v2052 = vpop.f32.mrf.mxu0
        %2053 = vmatprep.mubr.f32.mxu0 0.0
        %2054 = vmatmul.mubr.f32.gmra.mxu0 %v1969
        %v2055 = vpop.f32.mrf.mxu0
        %v2056 = vadd.f32 %v1506, %v2055
        %v2057 = vpop.f32.mrf.mxu0
        %2058 = vmatprep.mubr.f32.mxu0 0.0
        %2059 = vmatmul.mubr.f32.gmra.mxu0 %v1970
        %v2060 = vpop.f32.mrf.mxu0
        %v2061 = vadd.f32 %v1506, %v2060
        %v2062 = vpop.f32.mrf.mxu0
        %2063 = vmatprep.mubr.f32.mxu0 0.0
        %2064 = vmatmul.mubr.f32.gmra.mxu0 %v1971
        %v2065 = vpop.f32.mrf.mxu0
        %v2066 = vadd.f32 %v1506, %v2065
        %v2067 = vpop.f32.mrf.mxu0
        %2068 = vmatprep.mubr.f32.mxu0 0.0
        %2069 = vmatmul.mubr.f32.gmra.mxu0 %v1972
        %v2070 = vpop.f32.mrf.mxu0
        %v2071 = vadd.f32 %v1506, %v2070
        %v2072 = vpop.f32.mrf.mxu0
        %2073 = vmatprep.mubr.f32.mxu0 0.0
        %2074 = vmatmul.mubr.f32.gmra.mxu0 %v1973
        %v2075 = vpop.f32.mrf.mxu0
        %v2076 = vadd.f32 %v1506, %v2075
        %v2077 = vpop.f32.mrf.mxu0
        %2078 = vdwg.mxu0
        %2079 = vst [vmem:[%s327] sm:$0xff] %v2041
        %2080 = vst [vmem:[%s327 + $0x8] sm:$0xff] %v2046
        %2081 = vst [vmem:[%s327 + $0x10] sm:$0xff] %v2051
        %2082 = vst [vmem:[%s327 + $0x18] sm:$0xff] %v2056
        %2083 = vst [vmem:[%s327 + $0x20] sm:$0xff] %v2061
        %2084 = vst [vmem:[%s327 + $0x28] sm:$0xff] %v2066
        %2085 = vst [vmem:[%s327 + $0x30] sm:$0xff] %v2071
        %2086 = vst [vmem:[%s327 + $0x38] sm:$0xff] %v2076
        %s2087 = sand.u32 %s149, 1
        %s2088 = scalar_lea.sflag [#allocation4], %s2087
        %s2089 = sand.u32 %s149, 1
        %s2090 = smul.addr %s2089, 64
        %s2091 = scalar_lea.vmem [#allocation11], %s2090
        // Predicated region
        $region61: #{tpu_custom_call.1} parent=39 // pred_check
          %p2092 = pneg %p159
        $region62: #{tpu_custom_call.1} parent=39 // pred_check_branch
          %2094 = sbr.rel (%p2092) target = $region64
        $region63: #{tpu_custom_call.1} parent=39 // pred_region
          %s2095 = smul.u32 4, %s26
          %s2097 = ssub.s32 1024, 1024
          %2098 = vsyncadd %s2088, %s2097
          %s2099 = smul.addr %s2095, 2
          %s2100 = smul.addr %s2099, 128
          %s2101 = scalar_lea.hbm %s5, %s2100
          %s2102 = sshll.u32 %s2091, 4
          %s2103 = int_to_ptr.vmem [resolvable:$true] %s2102
          %2108 = dma.vmem_to_hbm [thread:$0]  %s2103, 1024, %s2101, %s2088, 128, 128, 8
        $region64: #{tpu_custom_call.1} parent=39 // pred_fallthru
          _
      $region40: #{tpu_custom_call.1} parent=5 // pred_fallthru
        _
      %p2109 = scmp.le.s32.totalorder 2, %s21
      // Predicated region
      $region65: #{tpu_custom_call.1} parent=5 // pred_check
        %p2110 = pneg %p2109
      $region66: #{tpu_custom_call.1} parent=5 // pred_check_branch
        %2112 = sbr.rel (%p2110) target = $region68
      $region67: #{tpu_custom_call.1} parent=5 // pred_region
        %s2113 = ssub.s32 %s21, 2
        // Predicated region
        $region69: #{tpu_custom_call.1} parent=67 // pred_check
          %p2114 = pneg %p165
        $region70: #{tpu_custom_call.1} parent=67 // pred_check_branch
          %2116 = sbr.rel (%p2114) target = $region72
        $region71: #{tpu_custom_call.1} parent=67 // pred_region
          %s2117 = sand.u32 %s150, 1
          %s2118 = scalar_lea.sflag [#allocation4], %s2117
          %s2119 = sand.u32 %s150, 1
          %s2120 = smul.addr %s2119, 64
          %s2121 = scalar_lea.vmem [#allocation11], %s2120
          %2122 = dma.done %s2118, 1024
        $region72: #{tpu_custom_call.1} parent=67 // pred_fallthru
          _
      $region68: #{tpu_custom_call.1} parent=5 // pred_fallthru
        _
    $region6: #{tpu_custom_call.1} parent=1 // loop_footer
      %s25 = sadd.s32 1, %s21
    $region7: #{tpu_custom_call.1} parent=1 // loop_footer_branch
      %20 = sbr.rel target = $region3
    $region8: #{tpu_custom_call.1} parent=1 // loop_exit
      _
    %2123 = vsyncpa [#allocation3], 1
    %s2124 = scalar_lea.sflag [#allocation3], 1
    %2125 = vsyncpa %s2124, 1
    %2126 = vsyncpa [#allocation6], 1
    %s2127 = scalar_lea.sflag [#allocation6], 1
    %2128 = vsyncpa %s2127, 1
    %2129 = vsyncpa [#allocation9], 1
    %2130 = vsyncpa [#allocation4], 1
    %s2131 = scalar_lea.sflag [#allocation4], 1
    %2132 = vsyncpa %s2131, 1

</llo_original>
